<compile_context>
chip_gen: v6e
topology: v6e:2x2x1
jax: 0.10.0
libtpu: 0.0.40
codegen_flags: <defaults>
</compile_context>

<pallas_src>
import math

import jax
import jax.numpy as jnp
from jax.experimental import pallas as pl
from jax.experimental.pallas import tpu as pltpu


# ----------------------------- fused kernel ----------------------------------


def _fused_layer_kernel(x_ref, wemb_ref, bemb_ref,
                        wqkv_ref, bqkv_ref, wo_ref, bo_ref,
                        m_ref, mt_ref, out_ref):
    """Embedding + MHA + residual for one block of the attention-batch axis N.

    x_ref:    (B, C, L)        full input
    wemb_ref: (Nb, C)          rows [i*Nb, (i+1)*Nb) of nn.Linear(c_in, d_model).weight
    bemb_ref: (Nb, 1)          matching bias slice
    wqkv_ref: (E, 3E)          [Wq | Wk | Wv], pre-transposed so act @ W
    bqkv_ref: (1, 3E)          [bq | bk | bv]
    wo_ref:   (E, E)           out_proj.weight.T
    bo_ref:   (1, E)
    m_ref:    (E, H)           head-block indicator  M[e, h] = 1 iff e // hd == h
    mt_ref:   (H, E)           M transposed
    out_ref:  (B, Nb, E)       output block (E == L)
    """
    f32 = jnp.float32
    B, C, L = x_ref.shape
    Nb = wemb_ref.shape[0]
    E = wo_ref.shape[0]
    H = m_ref.shape[1]
    hd = E // H
    scale = 1.0 / math.sqrt(hd)
    T = B                                   # attention sequence axis == batch

    w_e = wemb_ref[...]                     # [Nb, C]
    b_e = bemb_ref[...]                     # [Nb, 1]

    # ---- embedding + transpose, directly in (T, N, E) layout -----------------
    # y[t, n, e] = sum_c w_emb[n, c] * x[t, c, e] + b_emb[n]
    y_rows = [jnp.dot(w_e, x_ref[b], preferred_element_type=f32) + b_e
              for b in range(T)]            # tiny static unroll (T == batch)
    y2 = jnp.concatenate(y_rows, axis=0)    # [T*Nb, E], row index = t*Nb + n

    # ---- fused q / k / v projection: one wide MXU matmul ----------------------
    qkv2 = jnp.dot(y2, wqkv_ref[...], preferred_element_type=f32) + bqkv_ref[...]
    q3 = qkv2[:, 0 * E:1 * E].reshape(T, Nb, E)   # 128-aligned lane slices
    k3 = qkv2[:, 1 * E:2 * E].reshape(T, Nb, E)
    v3 = qkv2[:, 2 * E:3 * E].reshape(T, Nb, E)

    # ---- scores: s[t, s, n, h] = scale * sum_{e in head h} q[t,n,e] k[s,n,e] ---
    qk = q3[:, None, :, :] * k3[None, :, :, :]                       # [T, T, Nb, E]
    s2 = jnp.dot(qk.reshape(T * T * Nb, E), m_ref[...],
                 preferred_element_type=f32) * scale                 # [T*T*Nb, H]
    s4 = s2.reshape(T, T, Nb, H)

    # ---- softmax over key axis (axis=1) ---------------------------------------
    s4 = s4 - jnp.max(s4, axis=1, keepdims=True)
    p4 = jnp.exp(s4)
    denom = jnp.sum(p4, axis=1, keepdims=True)
    p4 = p4 * pl.reciprocal(denom, approx=True)                      # EUP reciprocal

    # ---- context: ctx[t, n, e] = sum_s p[t, s, n, head(e)] * v[s, n, e] --------
    pe = jnp.dot(p4.reshape(T * T * Nb, H), mt_ref[...],
                 preferred_element_type=f32).reshape(T, T, Nb, E)
    ctx3 = jnp.sum(pe * v3[None, :, :, :], axis=1)                   # [T, Nb, E]

    # ---- output projection + residual (dropout = identity, eval mode) ---------
    chanx2 = (jnp.dot(ctx3.reshape(T * Nb, E), wo_ref[...],
                      preferred_element_type=f32) + bo_ref[...])
    out_ref[...] = (y2 + chanx2).reshape(T, Nb, E)


# ----------------------------- wrapper ----------------------------------------


def channel_embedding_forward(x, params, num_heads=8, n_blocks=2):
    """x: [B, C_in, L] float32 -> [B, d_model, L] float32 (L must equal d_model)."""
    B, C, L = x.shape
    D = params["w_emb"].shape[0]
    assert L == D, "nn.MultiheadAttention(d_model) requires the length axis == d_model"
    assert D % num_heads == 0
    hd = D // num_heads

    assert D % n_blocks == 0
    Db = D // n_blocks
    assert Db % 8 == 0 and D % 128 == 0, "need lane/sublane-aligned blocks"

    # Head-block indicator matrix: M[e, h] = 1 iff e belongs to head h.
    e_to_h = jnp.arange(D, dtype=jnp.int32) // hd
    m = (e_to_h[:, None] == jnp.arange(num_heads, dtype=jnp.int32)[None, :]
         ).astype(jnp.float32)                                       # [E, H]
    mt = m.T                                                         # [H, E]

    # Fused Q/K/V weight & bias: one wide in-projection matmul inside the kernel.
    w_qkv = jnp.concatenate([params["w_q"], params["w_k"], params["w_v"]], axis=1)  # [D, 3D]
    b_qkv = jnp.concatenate([params["b_q"], params["b_k"], params["b_v"]], axis=1)  # [1, 3D]

    full2 = lambda i: (0, 0)
    out = pl.pallas_call(
        _fused_layer_kernel,
        out_shape=jax.ShapeDtypeStruct((B, D, L), jnp.float32),
        grid=(n_blocks,),
        in_specs=[
            pl.BlockSpec((B, C, L), lambda i: (0, 0, 0)),            # x (full)
            pl.BlockSpec((Db, C), lambda i: (i, 0)),                 # w_emb block
            pl.BlockSpec((Db, 1), lambda i: (i, 0)),                 # b_emb block
            pl.BlockSpec((D, 3 * D), full2),                         # [Wq|Wk|Wv]
            pl.BlockSpec((1, 3 * D), full2),                         # [bq|bk|bv]
            pl.BlockSpec((D, D), full2), pl.BlockSpec((1, D), full2),  # Wo, bo
            pl.BlockSpec((D, num_heads), full2),                     # M
            pl.BlockSpec((num_heads, D), full2),                     # M^T
        ],
        out_specs=pl.BlockSpec((B, Db, L), lambda i: (0, i, 0)),
        compiler_params=pltpu.CompilerParams(dimension_semantics=("parallel",)),
    )(x, params["w_emb"], params["b_emb"],
      w_qkv, b_qkv, params["w_o"], params["b_o"], m, mt)

    return out                                                       # [B, D, L]


# ----------------------------- params & reference ------------------------------


def init_params(key, c_in, d_model):
    """Deterministic synthetic weights (shapes from the module's __init__).
    w_emb is torch-native [d_model, c_in]; projection matrices are pre-transposed
    so kernels compute x @ W."""
    ks = jax.random.split(key, 10)

    def u(k, shape, fan_in):
        b = 1.0 / math.sqrt(fan_in)
        return jax.random.uniform(k, shape, jnp.float32, -b, b)

    return {
        "w_emb": u(ks[0], (d_model, c_in), c_in),        # nn.Linear(c_in, d_model).weight
        "b_emb": u(ks[1], (d_model, 1), c_in),
        "w_q": u(ks[2], (d_model, d_model), d_model),    # in_proj_weight[0:D].T
        "b_q": u(ks[3], (1, d_model), d_model),
        "w_k": u(ks[4], (d_model, d_model), d_model),    # in_proj_weight[D:2D].T
        "b_k": u(ks[5], (1, d_model), d_model),
        "w_v": u(ks[6], (d_model, d_model), d_model),    # in_proj_weight[2D:3D].T
        "b_v": u(ks[7], (1, d_model), d_model),
        "w_o": u(ks[8], (d_model, d_model), d_model),    # out_proj.weight.T
        "b_o": u(ks[9], (1, d_model), d_model),
    }


def reference_forward(x, params, num_heads=8):
    """Pure-JAX replica of the PyTorch forward (eval mode)."""
    B, C, L = x.shape
    D = params["w_emb"].shape[0]
    hd = D // num_heads

    xe = jnp.einsum("bcl,dc->bld", x, params["w_emb"]) + params["b_emb"][:, 0]
    y = jnp.transpose(xe, (0, 2, 1))                                 # [B, D, L] = (T, N, E)

    q = jnp.einsum("tne,ef->tnf", y, params["w_q"]) + params["b_q"][0]
    k = jnp.einsum("tne,ef->tnf", y, params["w_k"]) + params["b_k"][0]
    v = jnp.einsum("tne,ef->tnf", y, params["w_v"]) + params["b_v"][0]

    qh = q.reshape(B, D, num_heads, hd)
    kh = k.reshape(B, D, num_heads, hd)
    vh = v.reshape(B, D, num_heads, hd)
    s = jnp.einsum("tnhd,snhd->nhts", qh, kh) / math.sqrt(hd)
    p = jax.nn.softmax(s, axis=-1)
    ctx = jnp.einsum("nhts,snhd->tnhd", p, vh).reshape(B, D, D)
    chanx = jnp.einsum("tne,ef->tnf", ctx, params["w_o"]) + params["b_o"][0]
    return y + chanx


# ----------------------------- main --------------------------------------------


if __name__ == "__main__":
    B, C_IN, D_MODEL = 2, 4, 128
    L = D_MODEL  # required: attention embed dim == length axis (see layout comment)

    key = jax.random.PRNGKey(0)
    kx, kp = jax.random.split(key)
    x = jax.random.normal(kx, (B, C_IN, L), jnp.float32)
    params = init_params(kp, C_IN, D_MODEL)

    out = jax.jit(channel_embedding_forward)(x, params)
    out = jax.block_until_ready(out)

    ref = reference_forward(x, params)
    assert out.shape == (B, D_MODEL, L), out.shape
    # tolerance 2e-3: approx (EUP) reciprocal in the softmax normalization
    if not jnp.allclose(out, ref, atol=2e-3, rtol=2e-3):
        raise AssertionError("Pallas kernel output mismatch vs JAX reference: "
                             f"max abs err = {jnp.max(jnp.abs(out - ref))}")
    print("KERNEL_OK")
</pallas_src>

<mosaic_0001>
module attributes {stable_mosaic.version = 11 : i64} {
  func.func @_fused_layer_kernel(%arg0: i32, %arg1: memref<2x4x128xf32, #tpu.memory_space<vmem>>, %arg2: memref<64x4xf32, #tpu.memory_space<vmem>>, %arg3: memref<64x1xf32, #tpu.memory_space<vmem>>, %arg4: memref<128x384xf32, #tpu.memory_space<vmem>>, %arg5: memref<1x384xf32, #tpu.memory_space<vmem>>, %arg6: memref<128x128xf32, #tpu.memory_space<vmem>>, %arg7: memref<1x128xf32, #tpu.memory_space<vmem>>, %arg8: memref<128x8xf32, #tpu.memory_space<vmem>>, %arg9: memref<8x128xf32, #tpu.memory_space<vmem>>, %arg10: memref<2x64x128xf32, #tpu.memory_space<vmem>>) attributes {dimension_semantics = [#tpu.dimension_semantics<parallel>], iteration_bounds = array<i64: 2>, scalar_prefetch = 0 : i64, scratch_operands = 0 : i64, tpu.core_type = #tpu.core_type<tc>, window_params = [{pipeline_mode = #tpu.pipeline_mode<synchronous>, transform_indices = @transform_0, window_bounds = array<i64: 2, 4, 128>}, {transform_indices = @transform_1, window_bounds = array<i64: 64, 4>}, {transform_indices = @transform_2, window_bounds = array<i64: 64, 1>}, {pipeline_mode = #tpu.pipeline_mode<synchronous>, transform_indices = @transform_3, window_bounds = array<i64: 128, 384>}, {pipeline_mode = #tpu.pipeline_mode<synchronous>, transform_indices = @transform_4, window_bounds = array<i64: 1, 384>}, {pipeline_mode = #tpu.pipeline_mode<synchronous>, transform_indices = @transform_5, window_bounds = array<i64: 128, 128>}, {pipeline_mode = #tpu.pipeline_mode<synchronous>, transform_indices = @transform_6, window_bounds = array<i64: 1, 128>}, {pipeline_mode = #tpu.pipeline_mode<synchronous>, transform_indices = @transform_7, window_bounds = array<i64: 128, 8>}, {pipeline_mode = #tpu.pipeline_mode<synchronous>, transform_indices = @transform_8, window_bounds = array<i64: 8, 128>}, {transform_indices = @transform_9, window_bounds = array<i64: 2, 64, 128>}]} {
    %c0 = arith.constant 0 : index
    %c0_0 = arith.constant 0 : index
    %0 = vector.load %arg2[%c0, %c0_0] : memref<64x4xf32, #tpu.memory_space<vmem>>, vector<64x4xf32>
    %c0_1 = arith.constant 0 : index
    %c0_2 = arith.constant 0 : index
    %1 = vector.load %arg3[%c0_1, %c0_2] : memref<64x1xf32, #tpu.memory_space<vmem>>, vector<64x1xf32>
    %c0_3 = arith.constant 0 : index
    %c0_4 = arith.constant 0 : index
    %c0_5 = arith.constant 0 : index
    %2 = vector.load %arg1[%c0_3, %c0_4, %c0_5] : memref<2x4x128xf32, #tpu.memory_space<vmem>>, vector<1x4x128xf32>
    %3 = vector.shape_cast %2 : vector<1x4x128xf32> to vector<4x128xf32>
    %cst = arith.constant dense<0.000000e+00> : vector<64x128xf32>
    %4 = tpu.matmul %0, %3, %cst {dimension_numbers = #tpu.dot_dimension_numbers<[1], [0], [0], [1], [0, 0, 1, 1], [], []>} : vector<64x4xf32>, vector<4x128xf32>, vector<64x128xf32> -> vector<64x128xf32>
    %5 = vector.broadcast %1 : vector<64x1xf32> to vector<64x128xf32>
    %6 = arith.addf %4, %5 : vector<64x128xf32>
    %c1 = arith.constant 1 : index
    %c0_6 = arith.constant 0 : index
    %c0_7 = arith.constant 0 : index
    %7 = vector.load %arg1[%c1, %c0_6, %c0_7] : memref<2x4x128xf32, #tpu.memory_space<vmem>>, vector<1x4x128xf32>
    %8 = vector.shape_cast %7 : vector<1x4x128xf32> to vector<4x128xf32>
    %cst_8 = arith.constant dense<0.000000e+00> : vector<64x128xf32>
    %9 = tpu.matmul %0, %8, %cst_8 {dimension_numbers = #tpu.dot_dimension_numbers<[1], [0], [0], [1], [0, 0, 1, 1], [], []>} : vector<64x4xf32>, vector<4x128xf32>, vector<64x128xf32> -> vector<64x128xf32>
    %10 = vector.broadcast %1 : vector<64x1xf32> to vector<64x128xf32>
    %11 = arith.addf %9, %10 : vector<64x128xf32>
    %12 = tpu.concatenate %6, %11 in 0 : vector<64x128xf32>, vector<64x128xf32> -> vector<128x128xf32>
    %c0_9 = arith.constant 0 : index
    %c0_10 = arith.constant 0 : index
    %13 = vector.load %arg4[%c0_9, %c0_10] : memref<128x384xf32, #tpu.memory_space<vmem>>, vector<128x384xf32>
    %cst_11 = arith.constant dense<0.000000e+00> : vector<128x384xf32>
    %14 = tpu.matmul %12, %13, %cst_11 {dimension_numbers = #tpu.dot_dimension_numbers<[1], [0], [0], [1], [0, 0, 1, 1], [], []>} : vector<128x128xf32>, vector<128x384xf32>, vector<128x384xf32> -> vector<128x384xf32>
    %c0_12 = arith.constant 0 : index
    %c0_13 = arith.constant 0 : index
    %15 = vector.load %arg5[%c0_12, %c0_13] : memref<1x384xf32, #tpu.memory_space<vmem>>, vector<1x384xf32>
    %16 = vector.broadcast %15 : vector<1x384xf32> to vector<128x384xf32>
    %17 = arith.addf %14, %16 : vector<128x384xf32>
    %18 = vector.extract_strided_slice %17 {offsets = [0, 0], sizes = [128, 128], strides = [1, 1]} : vector<128x384xf32> to vector<128x128xf32>
    %19 = vector.shape_cast %18 : vector<128x128xf32> to vector<2x64x128xf32>
    %20 = vector.extract_strided_slice %17 {offsets = [0, 128], sizes = [128, 128], strides = [1, 1]} : vector<128x384xf32> to vector<128x128xf32>
    %21 = vector.shape_cast %20 : vector<128x128xf32> to vector<2x64x128xf32>
    %22 = vector.extract_strided_slice %17 {offsets = [0, 256], sizes = [128, 128], strides = [1, 1]} : vector<128x384xf32> to vector<128x128xf32>
    %23 = vector.shape_cast %22 : vector<128x128xf32> to vector<2x64x128xf32>
    %24 = vector.shape_cast %19 : vector<2x64x128xf32> to vector<2x1x64x128xf32>
    %25 = vector.shape_cast %21 : vector<2x64x128xf32> to vector<1x2x64x128xf32>
    %26 = vector.broadcast %24 : vector<2x1x64x128xf32> to vector<2x2x64x128xf32>
    %27 = vector.broadcast %25 : vector<1x2x64x128xf32> to vector<2x2x64x128xf32>
    %28 = arith.mulf %26, %27 : vector<2x2x64x128xf32>
    %29 = vector.shape_cast %28 : vector<2x2x64x128xf32> to vector<256x128xf32>
    %c0_14 = arith.constant 0 : index
    %c0_15 = arith.constant 0 : index
    %30 = vector.load %arg8[%c0_14, %c0_15] : memref<128x8xf32, #tpu.memory_space<vmem>>, vector<128x8xf32>
    %cst_16 = arith.constant dense<0.000000e+00> : vector<256x8xf32>
    %31 = tpu.matmul %29, %30, %cst_16 {dimension_numbers = #tpu.dot_dimension_numbers<[1], [0], [0], [1], [0, 0, 1, 1], [], []>} : vector<256x128xf32>, vector<128x8xf32>, vector<256x8xf32> -> vector<256x8xf32>
    %cst_17 = arith.constant 2.500000e-01 : f32
    %32 = vector.broadcast %cst_17 : f32 to vector<256x8xf32>
    %33 = arith.mulf %31, %32 : vector<256x8xf32>
    %34 = vector.shape_cast %33 : vector<256x8xf32> to vector<2x2x64x8xf32>
    %cst_18 = arith.constant dense<0xFF800000> : vector<2x64x8xf32>
    %35 = vector.multi_reduction <maximumf>, %34, %cst_18 [1] : vector<2x2x64x8xf32> to vector<2x64x8xf32>
    %36 = vector.shape_cast %35 : vector<2x64x8xf32> to vector<2x1x64x8xf32>
    %37 = vector.broadcast %36 : vector<2x1x64x8xf32> to vector<2x2x64x8xf32>
    %38 = arith.subf %34, %37 : vector<2x2x64x8xf32>
    %39 = math.exp %38 : vector<2x2x64x8xf32>
    %cst_19 = arith.constant dense<0.000000e+00> : vector<2x64x8xf32>
    %40 = vector.multi_reduction <add>, %39, %cst_19 [1] : vector<2x2x64x8xf32> to vector<2x64x8xf32>
    %41 = vector.shape_cast %40 : vector<2x64x8xf32> to vector<2x1x64x8xf32>
    %42 = tpu.reciprocal %41 {approx = true} : vector<2x1x64x8xf32> -> vector<2x1x64x8xf32>
    %43 = vector.broadcast %42 : vector<2x1x64x8xf32> to vector<2x2x64x8xf32>
    %44 = arith.mulf %39, %43 : vector<2x2x64x8xf32>
    %45 = vector.shape_cast %44 : vector<2x2x64x8xf32> to vector<256x8xf32>
    %c0_20 = arith.constant 0 : index
    %c0_21 = arith.constant 0 : index
    %46 = vector.load %arg9[%c0_20, %c0_21] : memref<8x128xf32, #tpu.memory_space<vmem>>, vector<8x128xf32>
    %cst_22 = arith.constant dense<0.000000e+00> : vector<256x128xf32>
    %47 = tpu.matmul %45, %46, %cst_22 {dimension_numbers = #tpu.dot_dimension_numbers<[1], [0], [0], [1], [0, 0, 1, 1], [], []>} : vector<256x8xf32>, vector<8x128xf32>, vector<256x128xf32> -> vector<256x128xf32>
    %48 = vector.shape_cast %47 : vector<256x128xf32> to vector<2x2x64x128xf32>
    %49 = vector.shape_cast %23 : vector<2x64x128xf32> to vector<1x2x64x128xf32>
    %50 = vector.broadcast %49 : vector<1x2x64x128xf32> to vector<2x2x64x128xf32>
    %51 = arith.mulf %48, %50 : vector<2x2x64x128xf32>
    %cst_23 = arith.constant dense<0.000000e+00> : vector<2x64x128xf32>
    %52 = vector.multi_reduction <add>, %51, %cst_23 [1] : vector<2x2x64x128xf32> to vector<2x64x128xf32>
    %53 = vector.shape_cast %52 : vector<2x64x128xf32> to vector<128x128xf32>
    %c0_24 = arith.constant 0 : index
    %c0_25 = arith.constant 0 : index
    %54 = vector.load %arg6[%c0_24, %c0_25] : memref<128x128xf32, #tpu.memory_space<vmem>>, vector<128x128xf32>
    %cst_26 = arith.constant dense<0.000000e+00> : vector<128x128xf32>
    %55 = tpu.matmul %53, %54, %cst_26 {dimension_numbers = #tpu.dot_dimension_numbers<[1], [0], [0], [1], [0, 0, 1, 1], [], []>} : vector<128x128xf32>, vector<128x128xf32>, vector<128x128xf32> -> vector<128x128xf32>
    %c0_27 = arith.constant 0 : index
    %c0_28 = arith.constant 0 : index
    %56 = vector.load %arg7[%c0_27, %c0_28] : memref<1x128xf32, #tpu.memory_space<vmem>>, vector<1x128xf32>
    %57 = vector.broadcast %56 : vector<1x128xf32> to vector<128x128xf32>
    %58 = arith.addf %55, %57 : vector<128x128xf32>
    %59 = arith.addf %12, %58 : vector<128x128xf32>
    %60 = vector.shape_cast %59 : vector<128x128xf32> to vector<2x64x128xf32>
    %c0_29 = arith.constant 0 : index
    %c0_30 = arith.constant 0 : index
    %c0_31 = arith.constant 0 : index
    %61 = vector.load %arg10[%c0_29, %c0_30, %c0_31] : memref<2x64x128xf32, #tpu.memory_space<vmem>>, vector<2x64x128xf32>
    tpu.vector_store %arg10[%c0_29, %c0_30, %c0_31], %60 {strides = array<i32>} : memref<2x64x128xf32, #tpu.memory_space<vmem>>, vector<2x64x128xf32>,
    return
  }
  func.func @transform_0(%arg0: i32) -> (i32, i32, i32) {
    %c0_i32 = arith.constant 0 : i32
    %c0_i32_0 = arith.constant 0 : i32
    %c0_i32_1 = arith.constant 0 : i32
    %c0_i32_2 = arith.constant 0 : i32
    return %c0_i32, %c0_i32_0, %c0_i32_1 : i32, i32, i32
  }
  func.func @transform_1(%arg0: i32) -> (i32, i32) {
    %c0_i32 = arith.constant 0 : i32
    %c0_i32_0 = arith.constant 0 : i32
    return %arg0, %c0_i32 : i32, i32
  }
  func.func @transform_2(%arg0: i32) -> (i32, i32) {
    %c0_i32 = arith.constant 0 : i32
    %c0_i32_0 = arith.constant 0 : i32
    return %arg0, %c0_i32 : i32, i32
  }
  func.func @transform_3(%arg0: i32) -> (i32, i32) {
    %c0_i32 = arith.constant 0 : i32
    %c0_i32_0 = arith.constant 0 : i32
    %c0_i32_1 = arith.constant 0 : i32
    return %c0_i32, %c0_i32_0 : i32, i32
  }
  func.func @transform_4(%arg0: i32) -> (i32, i32) {
    %c0_i32 = arith.constant 0 : i32
    %c0_i32_0 = arith.constant 0 : i32
    %c0_i32_1 = arith.constant 0 : i32
    return %c0_i32, %c0_i32_0 : i32, i32
  }
  func.func @transform_5(%arg0: i32) -> (i32, i32) {
    %c0_i32 = arith.constant 0 : i32
    %c0_i32_0 = arith.constant 0 : i32
    %c0_i32_1 = arith.constant 0 : i32
    return %c0_i32, %c0_i32_0 : i32, i32
  }
  func.func @transform_6(%arg0: i32) -> (i32, i32) {
    %c0_i32 = arith.constant 0 : i32
    %c0_i32_0 = arith.constant 0 : i32
    %c0_i32_1 = arith.constant 0 : i32
    return %c0_i32, %c0_i32_0 : i32, i32
  }
  func.func @transform_7(%arg0: i32) -> (i32, i32) {
    %c0_i32 = arith.constant 0 : i32
    %c0_i32_0 = arith.constant 0 : i32
    %c0_i32_1 = arith.constant 0 : i32
    return %c0_i32, %c0_i32_0 : i32, i32
  }
  func.func @transform_8(%arg0: i32) -> (i32, i32) {
    %c0_i32 = arith.constant 0 : i32
    %c0_i32_0 = arith.constant 0 : i32
    %c0_i32_1 = arith.constant 0 : i32
    return %c0_i32, %c0_i32_0 : i32, i32
  }
  func.func @transform_9(%arg0: i32) -> (i32, i32, i32) {
    %c0_i32 = arith.constant 0 : i32
    %c0_i32_0 = arith.constant 0 : i32
    %c0_i32_1 = arith.constant 0 : i32
    return %c0_i32, %arg0, %c0_i32_0 : i32, i32, i32
  }
}

</mosaic_0001>

<llo_original>
// kernel: channel_embedding_forward.1
$region0: #{channel_embedding_forward.1}
  #allocation0 [shape = 'u32[]', space=smem, size = 0x4, offset = 0x4, fixed_abs, tag = 'smem constant byte address 0x4 - core index']
  #allocation1 [shape = 'u32[144,128]{1,0:T(1,128)}', space=vmem, size = 0x12000, scoped, tag = 'internal scratch']
  #allocation4 [shape = 's32[]', space=sflag, size = 0x4, offset = 0, fixed_abs, tag = 'sflag constant byte address 0x0 - dummy sync flag']
  %s0 = inlined_call_operand.vmem [shape: f32[2,4,128], index: 0, kind: input, shape index: {}]
  %s1 = inlined_call_operand.vmem [shape: f32[128,4], index: 1, kind: input, shape index: {}]
  %s2 = inlined_call_operand.vmem [shape: f32[128,1], index: 2, kind: input, shape index: {}]
  %s3 = inlined_call_operand.vmem [shape: f32[128,384], index: 3, kind: input, shape index: {}]
  %s4 = inlined_call_operand.vmem [shape: f32[1,384], index: 4, kind: input, shape index: {}]
  %s5 = inlined_call_operand.vmem [shape: f32[128,128], index: 5, kind: input, shape index: {}]
  %s6 = inlined_call_operand.vmem [shape: f32[1,128], index: 6, kind: input, shape index: {}]
  %s7 = inlined_call_operand.vmem [shape: f32[128,8], index: 7, kind: input, shape index: {}]
  %s8 = inlined_call_operand.vmem [shape: f32[8,128], index: 8, kind: input, shape index: {}]
  %s9 = inlined_call_operand.hbm [shape: f32[2,128,128], index: 9, kind: output, shape index: {}]
  %s10 = sld [smem:[#allocation0]]
  $region69: #{channel_embedding_forward.1} parent=0
    _
  %s12 = ssub.s32 1, %s10
  %s13 = scalar_select 0, %s12, %s10
  $region1: #{channel_embedding_forward.1} parent=0
    #allocation2 [shape = 'u8[131072]{0}', space=vmem, size = 0x20000, scoped, tag = 'output window, operand 0']
    #allocation3 [shape = 's32[2]{0}', space=sflag, size = 0x8, scoped, tag = 'scoped memory for channel_embedding_forward.1']
    %14 = vsyncpa [#allocation3], 0
    %s15 = scalar_lea.sflag [#allocation3], 1
    %16 = vsyncpa %s15, 0
    loop: start=0, step=1, limit=4
    $region2: #{channel_embedding_forward.1} parent=1 // loop_pre_header
      _
    $region3: #{channel_embedding_forward.1} parent=1 // loop_header
      %s18 = sphi 0, %s22
      %p19 = scmp.ge.s32.totalorder %s18, 4
      %s26 = sphi 0, %s26
      %s28 = sphi 0, %s26
      %s29 = sphi 0, %s28
      %s43 = sphi 0, %s29
      %s49 = sphi 0, %s51
      %s52 = sphi 0, %s49
      %s53 = sphi 0, %s52
      %s69 = sphi 0, %s53
      %s75 = sphi 0, %s77
      %s78 = sphi 0, %s75
      %s79 = sphi 0, %s78
      %s95 = sphi 0, %s79
      %s99 = sphi 0, %s99
      %s101 = sphi 0, %s99
      %s102 = sphi 0, %s101
      %s116 = sphi 0, %s102
      %s120 = sphi 0, %s120
      %s122 = sphi 0, %s120
      %s123 = sphi 0, %s122
      %s137 = sphi 0, %s123
      %s141 = sphi 0, %s141
      %s143 = sphi 0, %s141
      %s144 = sphi 0, %s143
      %s158 = sphi 0, %s144
      %s162 = sphi 0, %s162
      %s164 = sphi 0, %s162
      %s165 = sphi 0, %s164
      %s179 = sphi 0, %s165
      %s183 = sphi 0, %s183
      %s185 = sphi 0, %s183
      %s186 = sphi 0, %s185
      %s200 = sphi 0, %s186
      %s204 = sphi 0, %s204
      %s206 = sphi 0, %s204
      %s207 = sphi 0, %s206
      %s221 = sphi 0, %s207
      %s227 = sphi 0, %s229
      %s230 = sphi 0, %s227
      %s231 = sphi 0, %s230
      %s247 = sphi 0, %s231
    $region4: #{channel_embedding_forward.1} parent=1 // loop_header_branch
      %21 = sbr.rel (%p19) target = $region8
    $region5: #{channel_embedding_forward.1} parent=1 // loop_body
      %s23 = ssub.s32 %s18, 1
      %s24 = ssub.s32 %s18, 2
      %s25 = sadd.s32 %s18, 1
      %s27 = sadd.s32 %s26, 1
      %p30 = scmp.eq.s32.totalorder %s18, 1
      %p31 = scmp.ne.s32.totalorder %s26, %s28
      %p32 = scmp.eq.s32.totalorder %s18, 0
      %p33 = por %p31, %p32
      %p34 = scmp.ne.s32.totalorder %s26, %s28
      %p35 = scmp.eq.s32.totalorder %s23, 1
      %p36 = por %p34, %p35
      %p37 = scmp.ne.s32.totalorder %s28, %s29
      %p38 = scmp.eq.s32.totalorder %s23, 0
      %p39 = por %p37, %p38
      %p40 = scmp.ne.s32.totalorder %s28, %s29
      %p41 = scmp.eq.s32.totalorder %s24, 1
      %p42 = por %p40, %p41
      %p44 = scmp.ne.s32.totalorder %s29, %s43
      %p45 = scmp.eq.s32.totalorder %s24, 0
      %p46 = por %p44, %p45
      %s47 = ssub.s32 %s18, %s25
      %p48 = scmp.eq.s32.totalorder %s47, 0
      %s50 = sadd.s32 %s49, 1
      %s51 = scalar_select %p48, %s49, %s50
      %p54 = pneg %p48
      %p55 = scmp.eq.s32.totalorder %s18, 1
      %p56 = por %p54, %p55
      %p57 = scmp.ne.s32.totalorder %s49, %s52
      %p58 = scmp.eq.s32.totalorder %s18, 0
      %p59 = por %p57, %p58
      %p60 = scmp.ne.s32.totalorder %s49, %s52
      %p61 = scmp.eq.s32.totalorder %s23, 1
      %p62 = por %p60, %p61
      %p63 = scmp.ne.s32.totalorder %s52, %s53
      %p64 = scmp.eq.s32.totalorder %s23, 0
      %p65 = por %p63, %p64
      %p66 = scmp.ne.s32.totalorder %s52, %s53
      %p67 = scmp.eq.s32.totalorder %s24, 1
      %p68 = por %p66, %p67
      %p70 = scmp.ne.s32.totalorder %s53, %s69
      %p71 = scmp.eq.s32.totalorder %s24, 0
      %p72 = por %p70, %p71
      %s73 = ssub.s32 %s18, %s25
      %p74 = scmp.eq.s32.totalorder %s73, 0
      %s76 = sadd.s32 %s75, 1
      %s77 = scalar_select %p74, %s75, %s76
      %p80 = pneg %p74
      %p81 = scmp.eq.s32.totalorder %s18, 1
      %p82 = por %p80, %p81
      %p83 = scmp.ne.s32.totalorder %s75, %s78
      %p84 = scmp.eq.s32.totalorder %s18, 0
      %p85 = por %p83, %p84
      %p86 = scmp.ne.s32.totalorder %s75, %s78
      %p87 = scmp.eq.s32.totalorder %s23, 1
      %p88 = por %p86, %p87
      %p89 = scmp.ne.s32.totalorder %s78, %s79
      %p90 = scmp.eq.s32.totalorder %s23, 0
      %p91 = por %p89, %p90
      %p92 = scmp.ne.s32.totalorder %s78, %s79
      %p93 = scmp.eq.s32.totalorder %s24, 1
      %p94 = por %p92, %p93
      %p96 = scmp.ne.s32.totalorder %s79, %s95
      %p97 = scmp.eq.s32.totalorder %s24, 0
      %p98 = por %p96, %p97
      %s100 = sadd.s32 %s99, 1
      %p103 = scmp.eq.s32.totalorder %s18, 1
      %p104 = scmp.ne.s32.totalorder %s99, %s101
      %p105 = scmp.eq.s32.totalorder %s18, 0
      %p106 = por %p104, %p105
      %p107 = scmp.ne.s32.totalorder %s99, %s101
      %p108 = scmp.eq.s32.totalorder %s23, 1
      %p109 = por %p107, %p108
      %p110 = scmp.ne.s32.totalorder %s101, %s102
      %p111 = scmp.eq.s32.totalorder %s23, 0
      %p112 = por %p110, %p111
      %p113 = scmp.ne.s32.totalorder %s101, %s102
      %p114 = scmp.eq.s32.totalorder %s24, 1
      %p115 = por %p113, %p114
      %p117 = scmp.ne.s32.totalorder %s102, %s116
      %p118 = scmp.eq.s32.totalorder %s24, 0
      %p119 = por %p117, %p118
      %s121 = sadd.s32 %s120, 1
      %p124 = scmp.eq.s32.totalorder %s18, 1
      %p125 = scmp.ne.s32.totalorder %s120, %s122
      %p126 = scmp.eq.s32.totalorder %s18, 0
      %p127 = por %p125, %p126
      %p128 = scmp.ne.s32.totalorder %s120, %s122
      %p129 = scmp.eq.s32.totalorder %s23, 1
      %p130 = por %p128, %p129
      %p131 = scmp.ne.s32.totalorder %s122, %s123
      %p132 = scmp.eq.s32.totalorder %s23, 0
      %p133 = por %p131, %p132
      %p134 = scmp.ne.s32.totalorder %s122, %s123
      %p135 = scmp.eq.s32.totalorder %s24, 1
      %p136 = por %p134, %p135
      %p138 = scmp.ne.s32.totalorder %s123, %s137
      %p139 = scmp.eq.s32.totalorder %s24, 0
      %p140 = por %p138, %p139
      %s142 = sadd.s32 %s141, 1
      %p145 = scmp.eq.s32.totalorder %s18, 1
      %p146 = scmp.ne.s32.totalorder %s141, %s143
      %p147 = scmp.eq.s32.totalorder %s18, 0
      %p148 = por %p146, %p147
      %p149 = scmp.ne.s32.totalorder %s141, %s143
      %p150 = scmp.eq.s32.totalorder %s23, 1
      %p151 = por %p149, %p150
      %p152 = scmp.ne.s32.totalorder %s143, %s144
      %p153 = scmp.eq.s32.totalorder %s23, 0
      %p154 = por %p152, %p153
      %p155 = scmp.ne.s32.totalorder %s143, %s144
      %p156 = scmp.eq.s32.totalorder %s24, 1
      %p157 = por %p155, %p156
      %p159 = scmp.ne.s32.totalorder %s144, %s158
      %p160 = scmp.eq.s32.totalorder %s24, 0
      %p161 = por %p159, %p160
      %s163 = sadd.s32 %s162, 1
      %p166 = scmp.eq.s32.totalorder %s18, 1
      %p167 = scmp.ne.s32.totalorder %s162, %s164
      %p168 = scmp.eq.s32.totalorder %s18, 0
      %p169 = por %p167, %p168
      %p170 = scmp.ne.s32.totalorder %s162, %s164
      %p171 = scmp.eq.s32.totalorder %s23, 1
      %p172 = por %p170, %p171
      %p173 = scmp.ne.s32.totalorder %s164, %s165
      %p174 = scmp.eq.s32.totalorder %s23, 0
      %p175 = por %p173, %p174
      %p176 = scmp.ne.s32.totalorder %s164, %s165
      %p177 = scmp.eq.s32.totalorder %s24, 1
      %p178 = por %p176, %p177
      %p180 = scmp.ne.s32.totalorder %s165, %s179
      %p181 = scmp.eq.s32.totalorder %s24, 0
      %p182 = por %p180, %p181
      %s184 = sadd.s32 %s183, 1
      %p187 = scmp.eq.s32.totalorder %s18, 1
      %p188 = scmp.ne.s32.totalorder %s183, %s185
      %p189 = scmp.eq.s32.totalorder %s18, 0
      %p190 = por %p188, %p189
      %p191 = scmp.ne.s32.totalorder %s183, %s185
      %p192 = scmp.eq.s32.totalorder %s23, 1
      %p193 = por %p191, %p192
      %p194 = scmp.ne.s32.totalorder %s185, %s186
      %p195 = scmp.eq.s32.totalorder %s23, 0
      %p196 = por %p194, %p195
      %p197 = scmp.ne.s32.totalorder %s185, %s186
      %p198 = scmp.eq.s32.totalorder %s24, 1
      %p199 = por %p197, %p198
      %p201 = scmp.ne.s32.totalorder %s186, %s200
      %p202 = scmp.eq.s32.totalorder %s24, 0
      %p203 = por %p201, %p202
      %s205 = sadd.s32 %s204, 1
      %p208 = scmp.eq.s32.totalorder %s18, 1
      %p209 = scmp.ne.s32.totalorder %s204, %s206
      %p210 = scmp.eq.s32.totalorder %s18, 0
      %p211 = por %p209, %p210
      %p212 = scmp.ne.s32.totalorder %s204, %s206
      %p213 = scmp.eq.s32.totalorder %s23, 1
      %p214 = por %p212, %p213
      %p215 = scmp.ne.s32.totalorder %s206, %s207
      %p216 = scmp.eq.s32.totalorder %s23, 0
      %p217 = por %p215, %p216
      %p218 = scmp.ne.s32.totalorder %s206, %s207
      %p219 = scmp.eq.s32.totalorder %s24, 1
      %p220 = por %p218, %p219
      %p222 = scmp.ne.s32.totalorder %s207, %s221
      %p223 = scmp.eq.s32.totalorder %s24, 0
      %p224 = por %p222, %p223
      %s225 = ssub.s32 %s18, %s25
      %p226 = scmp.eq.s32.totalorder %s225, 0
      %s228 = sadd.s32 %s227, 1
      %s229 = scalar_select %p226, %s227, %s228
      %p232 = pneg %p226
      %p233 = scmp.eq.s32.totalorder %s18, 1
      %p234 = por %p232, %p233
      %p235 = scmp.ne.s32.totalorder %s227, %s230
      %p236 = scmp.eq.s32.totalorder %s18, 0
      %p237 = por %p235, %p236
      %p238 = scmp.ne.s32.totalorder %s227, %s230
      %p239 = scmp.eq.s32.totalorder %s23, 1
      %p240 = por %p238, %p239
      %p241 = scmp.ne.s32.totalorder %s230, %s231
      %p242 = scmp.eq.s32.totalorder %s23, 0
      %p243 = por %p241, %p242
      %p244 = scmp.ne.s32.totalorder %s230, %s231
      %p245 = scmp.eq.s32.totalorder %s24, 1
      %p246 = por %p244, %p245
      %p248 = scmp.ne.s32.totalorder %s231, %s247
      %p249 = scmp.eq.s32.totalorder %s24, 0
      %p250 = por %p248, %p249
      %p251 = scmp.le.s32.totalorder 1, %s18
      %p252 = scmp.lt.s32.totalorder %s18, 3
      %p253 = pnand %p251, %p252
      %p254 = pneg %p253
      // Predicated region
      $region9: #{channel_embedding_forward.1} parent=5 // pred_check
        _
      $region10: #{channel_embedding_forward.1} parent=5 // pred_check_branch
        %256 = sbr.rel (%p253) target = $region12
      $region11: #{channel_embedding_forward.1} parent=5 // pred_region
        %s257 = ssub.s32 %s18, 1
        // Predicated region
        $region13: #{channel_embedding_forward.1} parent=11 // pred_check
          %p258 = pneg %p39
        $region14: #{channel_embedding_forward.1} parent=11 // pred_check_branch
          %260 = sbr.rel (%p258) target = $region16
        $region15: #{channel_embedding_forward.1} parent=11 // pred_region
          _
        $region16: #{channel_embedding_forward.1} parent=11 // pred_fallthru
          _
        // Predicated region
        $region17: #{channel_embedding_forward.1} parent=11 // pred_check
          %p261 = pneg %p112
        $region18: #{channel_embedding_forward.1} parent=11 // pred_check_branch
          %263 = sbr.rel (%p261) target = $region20
        $region19: #{channel_embedding_forward.1} parent=11 // pred_region
          _
        $region20: #{channel_embedding_forward.1} parent=11 // pred_fallthru
          _
        // Predicated region
        $region21: #{channel_embedding_forward.1} parent=11 // pred_check
          %p264 = pneg %p133
        $region22: #{channel_embedding_forward.1} parent=11 // pred_check_branch
          %266 = sbr.rel (%p264) target = $region24
        $region23: #{channel_embedding_forward.1} parent=11 // pred_region
          _
        $region24: #{channel_embedding_forward.1} parent=11 // pred_fallthru
          _
        // Predicated region
        $region25: #{channel_embedding_forward.1} parent=11 // pred_check
          %p267 = pneg %p154
        $region26: #{channel_embedding_forward.1} parent=11 // pred_check_branch
          %269 = sbr.rel (%p267) target = $region28
        $region27: #{channel_embedding_forward.1} parent=11 // pred_region
          _
        $region28: #{channel_embedding_forward.1} parent=11 // pred_fallthru
          _
        // Predicated region
        $region29: #{channel_embedding_forward.1} parent=11 // pred_check
          %p270 = pneg %p175
        $region30: #{channel_embedding_forward.1} parent=11 // pred_check_branch
          %272 = sbr.rel (%p270) target = $region32
        $region31: #{channel_embedding_forward.1} parent=11 // pred_region
          _
        $region32: #{channel_embedding_forward.1} parent=11 // pred_fallthru
          _
        // Predicated region
        $region33: #{channel_embedding_forward.1} parent=11 // pred_check
          %p273 = pneg %p196
        $region34: #{channel_embedding_forward.1} parent=11 // pred_check_branch
          %275 = sbr.rel (%p273) target = $region36
        $region35: #{channel_embedding_forward.1} parent=11 // pred_region
          _
        $region36: #{channel_embedding_forward.1} parent=11 // pred_fallthru
          _
        // Predicated region
        $region37: #{channel_embedding_forward.1} parent=11 // pred_check
          %p276 = pneg %p217
        $region38: #{channel_embedding_forward.1} parent=11 // pred_check_branch
          %278 = sbr.rel (%p276) target = $region40
        $region39: #{channel_embedding_forward.1} parent=11 // pred_region
          _
        $region40: #{channel_embedding_forward.1} parent=11 // pred_fallthru
          _
      $region12: #{channel_embedding_forward.1} parent=5 // pred_fallthru
        _
      %p279 = scmp.lt.s32.totalorder %s18, 2
      // Predicated region
      $region41: #{channel_embedding_forward.1} parent=5 // pred_check
        %p280 = pneg %p279
      $region42: #{channel_embedding_forward.1} parent=5 // pred_check_branch
        %282 = sbr.rel (%p280) target = $region44
      $region43: #{channel_embedding_forward.1} parent=5 // pred_region
        // Predicated region
        $region45: #{channel_embedding_forward.1} parent=43 // pred_check
          %p283 = pneg %p59
        $region46: #{channel_embedding_forward.1} parent=43 // pred_check_branch
          %285 = sbr.rel (%p283) target = $region48
        $region47: #{channel_embedding_forward.1} parent=43 // pred_region
          %s286 = smul.u32 8, %s18
          %p287 = scmp.lt.s32.totalorder %s286, 15
          %s288 = scalar_select %p287, %s286, 15
          %s289 = smul.addr %s288, 8
          %s290 = scalar_lea.vmem %s1, %s289
          %s291 = smul.u32 8, %s18
        $region48: #{channel_embedding_forward.1} parent=43 // pred_fallthru
          _
        // Predicated region
        $region49: #{channel_embedding_forward.1} parent=43 // pred_check
          %p292 = pneg %p85
        $region50: #{channel_embedding_forward.1} parent=43 // pred_check_branch
          %294 = sbr.rel (%p292) target = $region52
        $region51: #{channel_embedding_forward.1} parent=43 // pred_region
          %s295 = smul.u32 8, %s18
          %p296 = scmp.lt.s32.totalorder %s295, 15
          %s297 = scalar_select %p296, %s295, 15
          %s298 = smul.addr %s297, 8
          %s299 = scalar_lea.vmem %s2, %s298
          %s300 = smul.u32 8, %s18
        $region52: #{channel_embedding_forward.1} parent=43 // pred_fallthru
          _
      $region44: #{channel_embedding_forward.1} parent=5 // pred_fallthru
        _
      %p301 = scmp.le.s32.totalorder 1, %s18
      %p302 = scmp.lt.s32.totalorder %s18, 3
      %p303 = pnand %p301, %p302
      %p304 = pneg %p303
      // Predicated region
      $region53: #{channel_embedding_forward.1} parent=5 // pred_check
        _
      $region54: #{channel_embedding_forward.1} parent=5 // pred_check_branch
        %306 = sbr.rel (%p303) target = $region56
      $region55: #{channel_embedding_forward.1} parent=5 // pred_region
        %s307 = ssub.s32 %s18, 1
        %p308 = pneg %p39
        %p309 = pneg %p36
        %s310 = smul.u32 8, %s23
        %p311 = scmp.lt.s32.totalorder %s310, 15
        %s312 = scalar_select %p311, %s310, 15
        %s313 = smul.addr %s312, 8
        %s314 = scalar_lea.vmem %s1, %s313
        %p315 = pneg %p65
        %p316 = pneg %p62
        %s317 = smul.u32 8, %s23
        %p318 = scmp.lt.s32.totalorder %s317, 15
        %s319 = scalar_select %p318, %s317, 15
        %s320 = smul.addr %s319, 8
        %s321 = scalar_lea.vmem %s2, %s320
        %p322 = pneg %p91
        %p323 = pneg %p88
        %p324 = pneg %p112
        %p325 = pneg %p109
        %p326 = pneg %p133
        %p327 = pneg %p130
        %p328 = pneg %p154
        %p329 = pneg %p151
        %p330 = pneg %p175
        %p331 = pneg %p172
        %p332 = pneg %p196
        %p333 = pneg %p193
        %p334 = pneg %p217
        %p335 = pneg %p214
        %p336 = pneg %p243
        %p337 = pneg %p240
        %s338 = sand.u32 %s230, 1
        %s339 = scalar_lea.sflag [#allocation3], %s338
        %s340 = sand.u32 %s230, 1
        %s341 = smul.addr %s340, 128
        %s342 = scalar_lea.vmem [#allocation2], %s341
        %s343 = smul.u32 8, %s23
        %p344 = scmp.lt.s32.totalorder %s343, 15
        %s345 = scalar_select %p344, %s343, 15
        %s346 = smul.addr %s345, 8
        %s347 = scalar_lea.vmem %s1, %s346
        %s348 = smul.u32 8, %s23
        %s349 = smul.u32 8, %s23
        %p350 = scmp.lt.s32.totalorder %s349, 15
        %s351 = scalar_select %p350, %s349, 15
        %s352 = smul.addr %s351, 8
        %s353 = scalar_lea.vmem %s2, %s352
        %s354 = smul.u32 8, %s23
        %s355 = smul.u32 8, %s23
        %v356 = vld [vmem:[%s347] sm:$0xff]
        %v357 = vld [vmem:[%s347 + $0x8] sm:$0xff]
        %v358 = vld [vmem:[%s347 + $0x10] sm:$0xff]
        %v359 = vld [vmem:[%s347 + $0x18] sm:$0xff]
        %v360 = vld [vmem:[%s347 + $0x20] sm:$0xff]
        %v361 = vld [vmem:[%s347 + $0x28] sm:$0xff]
        %v362 = vld [vmem:[%s347 + $0x30] sm:$0xff]
        %v363 = vld [vmem:[%s347 + $0x38] sm:$0xff]
        %v364 = vld [vmem:[%s353] sm:$0xff]
        %v365 = vld [vmem:[%s353 + $0x8] sm:$0xff]
        %v366 = vld [vmem:[%s353 + $0x10] sm:$0xff]
        %v367 = vld [vmem:[%s353 + $0x18] sm:$0xff]
        %v368 = vld [vmem:[%s353 + $0x20] sm:$0xff]
        %v369 = vld [vmem:[%s353 + $0x28] sm:$0xff]
        %v370 = vld [vmem:[%s353 + $0x30] sm:$0xff]
        %v371 = vld [vmem:[%s353 + $0x38] sm:$0xff]
        %v372 = vld [vmem:[%s0] sm:$0xf]
        %374 = vset.pattern.permute.xlu0 0
        %375 = vperm.xlu0 %374, %v364
        %v376 = vpop.permute.xlu0 %375
        %379 = vset.pattern.permute.xlu0 0
        %380 = vperm.xlu0 %379, %v365
        %v381 = vpop.permute.xlu0 %380
        %384 = vset.pattern.permute.xlu0 0
        %385 = vperm.xlu0 %384, %v366
        %v386 = vpop.permute.xlu0 %385
        %389 = vset.pattern.permute.xlu0 0
        %390 = vperm.xlu0 %389, %v367
        %v391 = vpop.permute.xlu0 %390
        %394 = vset.pattern.permute.xlu0 0
        %395 = vperm.xlu0 %394, %v368
        %v396 = vpop.permute.xlu0 %395
        %399 = vset.pattern.permute.xlu0 0
        %400 = vperm.xlu0 %399, %v369
        %v401 = vpop.permute.xlu0 %400
        %404 = vset.pattern.permute.xlu0 0
        %405 = vperm.xlu0 %404, %v370
        %v406 = vpop.permute.xlu0 %405
        %409 = vset.pattern.permute.xlu0 0
        %410 = vperm.xlu0 %409, %v371
        %v411 = vpop.permute.xlu0 %410
        %vm413 = vcmask 31744
        %v415 = vsel %vm413, %v356, 0
        %v418 = vsel %vm413, %v357, 0
        %v421 = vsel %vm413, %v358, 0
        %v424 = vsel %vm413, %v359, 0
        %v427 = vsel %vm413, %v360, 0
        %v430 = vsel %vm413, %v361, 0
        %v433 = vsel %vm413, %v362, 0
        %v436 = vsel %vm413, %v363, 0
        %vm438 = vcmask 1043456
        %v440 = vsel %vm438, %v372, 0
        %442 = vmatprep.subr.mxu0 0.0
        %443 = vmatpush1.msra.mxu0 0.0
        %444 = vmatprep.subr.mxu0 0.0
        %445 = vmatpush1.msra.mxu0 0.0
        %446 = vmatprep.subr.mxu0 0.0
        %447 = vmatpush1.msra.mxu0 0.0
        %448 = vmatprep.subr.mxu0 0.0
        %449 = vmatpush1.msra.mxu0 0.0
        %450 = vmatprep.subr.mxu0 0.0
        %451 = vmatpush1.msra.mxu0 0.0
        %452 = vmatprep.subr.mxu0 0.0
        %453 = vmatpush1.msra.mxu0 0.0
        %454 = vmatprep.subr.mxu0 0.0
        %455 = vmatpush1.msra.mxu0 0.0
        %456 = vmatprep.subr.mxu0 0.0
        %457 = vmatpush1.msra.mxu0 0.0
        %458 = vmatprep.subr.mxu0 0.0
        %459 = vmatpush1.msra.mxu0 0.0
        %460 = vmatprep.subr.mxu0 0.0
        %461 = vmatpush1.msra.mxu0 0.0
        %462 = vmatprep.subr.mxu0 0.0
        %463 = vmatpush1.msra.mxu0 0.0
        %464 = vmatprep.subr.mxu0 0.0
        %465 = vmatpush1.msra.mxu0 0.0
        %466 = vmatprep.subr.mxu0 0.0
        %467 = vmatpush1.msra.mxu0 0.0
        %468 = vmatprep.subr.mxu0 0.0
        %469 = vmatpush1.msra.mxu0 0.0
        %470 = vmatprep.subr.mxu0 0.0
        %471 = vmatpush1.msra.mxu0 0.0
        %472 = vmatprep.subr.mxu0 0.0
        %473 = vmatpush1.msra.mxu0 %v440
        %474 = vmatprep.subr.mxu0 0.0
        %475 = vmatpush2.msra.mxu0 0.0
        %476 = vmatprep.subr.mxu0 0.0
        %477 = vmatpush2.msra.mxu0 0.0
        %478 = vmatprep.subr.mxu0 0.0
        %479 = vmatpush2.msra.mxu0 0.0
        %480 = vmatprep.subr.mxu0 0.0
        %481 = vmatpush2.msra.mxu0 0.0
        %482 = vmatprep.subr.mxu0 0.0
        %483 = vmatpush2.msra.mxu0 0.0
        %484 = vmatprep.subr.mxu0 0.0
        %485 = vmatpush2.msra.mxu0 0.0
        %486 = vmatprep.subr.mxu0 0.0
        %487 = vmatpush2.msra.mxu0 0.0
        %488 = vmatprep.subr.mxu0 0.0
        %489 = vmatpush2.msra.mxu0 0.0
        %490 = vmatprep.subr.mxu0 0.0
        %491 = vmatpush2.msra.mxu0 0.0
        %492 = vmatprep.subr.mxu0 0.0
        %493 = vmatpush2.msra.mxu0 0.0
        %494 = vmatprep.subr.mxu0 0.0
        %495 = vmatpush2.msra.mxu0 0.0
        %496 = vmatprep.subr.mxu0 0.0
        %497 = vmatpush2.msra.mxu0 0.0
        %498 = vmatprep.subr.mxu0 0.0
        %499 = vmatpush2.msra.mxu0 0.0
        %500 = vmatprep.subr.mxu0 0.0
        %501 = vmatpush2.msra.mxu0 0.0
        %502 = vmatprep.subr.mxu0 0.0
        %503 = vmatpush2.msra.mxu0 0.0
        %504 = vmatprep.subr.mxu0 0.0
        %505 = vmatpush2.msra.mxu0 0.0
        %506 = vmatprep.mubr.f32.mxu0 0.0
        %507 = vmatmul.mubr.f32.gmra.mxu0 %v415
        %v508 = vpop.f32.mrf.mxu0
        %v509 = vadd.f32 %v376, %v508
        %v510 = vpop.f32.mrf.mxu0
        %511 = vmatprep.mubr.f32.mxu0 0.0
        %512 = vmatmul.mubr.f32.gmra.mxu0 %v418
        %v513 = vpop.f32.mrf.mxu0
        %v514 = vadd.f32 %v381, %v513
        %v515 = vpop.f32.mrf.mxu0
        %516 = vmatprep.mubr.f32.mxu0 0.0
        %517 = vmatmul.mubr.f32.gmra.mxu0 %v421
        %v518 = vpop.f32.mrf.mxu0
        %v519 = vadd.f32 %v386, %v518
        %v520 = vpop.f32.mrf.mxu0
        %521 = vmatprep.mubr.f32.mxu0 0.0
        %522 = vmatmul.mubr.f32.gmra.mxu0 %v424
        %v523 = vpop.f32.mrf.mxu0
        %v524 = vadd.f32 %v391, %v523
        %v525 = vpop.f32.mrf.mxu0
        %526 = vmatprep.mubr.f32.mxu0 0.0
        %527 = vmatmul.mubr.f32.gmra.mxu0 %v427
        %v528 = vpop.f32.mrf.mxu0
        %v529 = vadd.f32 %v396, %v528
        %v530 = vpop.f32.mrf.mxu0
        %531 = vmatprep.mubr.f32.mxu0 0.0
        %532 = vmatmul.mubr.f32.gmra.mxu0 %v430
        %v533 = vpop.f32.mrf.mxu0
        %v534 = vadd.f32 %v401, %v533
        %v535 = vpop.f32.mrf.mxu0
        %536 = vmatprep.mubr.f32.mxu0 0.0
        %537 = vmatmul.mubr.f32.gmra.mxu0 %v433
        %v538 = vpop.f32.mrf.mxu0
        %v539 = vadd.f32 %v406, %v538
        %v540 = vpop.f32.mrf.mxu0
        %541 = vmatprep.mubr.f32.mxu0 0.0
        %542 = vmatmul.mubr.f32.gmra.mxu0 %v436
        %v543 = vpop.f32.mrf.mxu0
        %v544 = vadd.f32 %v411, %v543
        %v545 = vpop.f32.mrf.mxu0
        %546 = vdwg.mxu0
        %s547 = scalar_lea.vmem %s0, 4
        %v548 = vld [vmem:[%s547] sm:$0xf]
        %v550 = vsel %vm438, %v548, 0
        %552 = vmatprep.subr.mxu0 0.0
        %553 = vmatpush1.msra.mxu0 0.0
        %554 = vmatprep.subr.mxu0 0.0
        %555 = vmatpush1.msra.mxu0 0.0
        %556 = vmatprep.subr.mxu0 0.0
        %557 = vmatpush1.msra.mxu0 0.0
        %558 = vmatprep.subr.mxu0 0.0
        %559 = vmatpush1.msra.mxu0 0.0
        %560 = vmatprep.subr.mxu0 0.0
        %561 = vmatpush1.msra.mxu0 0.0
        %562 = vmatprep.subr.mxu0 0.0
        %563 = vmatpush1.msra.mxu0 0.0
        %564 = vmatprep.subr.mxu0 0.0
        %565 = vmatpush1.msra.mxu0 0.0
        %566 = vmatprep.subr.mxu0 0.0
        %567 = vmatpush1.msra.mxu0 0.0
        %568 = vmatprep.subr.mxu0 0.0
        %569 = vmatpush1.msra.mxu0 0.0
        %570 = vmatprep.subr.mxu0 0.0
        %571 = vmatpush1.msra.mxu0 0.0
        %572 = vmatprep.subr.mxu0 0.0
        %573 = vmatpush1.msra.mxu0 0.0
        %574 = vmatprep.subr.mxu0 0.0
        %575 = vmatpush1.msra.mxu0 0.0
        %576 = vmatprep.subr.mxu0 0.0
        %577 = vmatpush1.msra.mxu0 0.0
        %578 = vmatprep.subr.mxu0 0.0
        %579 = vmatpush1.msra.mxu0 0.0
        %580 = vmatprep.subr.mxu0 0.0
        %581 = vmatpush1.msra.mxu0 0.0
        %582 = vmatprep.subr.mxu0 0.0
        %583 = vmatpush1.msra.mxu0 %v550
        %584 = vmatprep.subr.mxu0 0.0
        %585 = vmatpush2.msra.mxu0 0.0
        %586 = vmatprep.subr.mxu0 0.0
        %587 = vmatpush2.msra.mxu0 0.0
        %588 = vmatprep.subr.mxu0 0.0
        %589 = vmatpush2.msra.mxu0 0.0
        %590 = vmatprep.subr.mxu0 0.0
        %591 = vmatpush2.msra.mxu0 0.0
        %592 = vmatprep.subr.mxu0 0.0
        %593 = vmatpush2.msra.mxu0 0.0
        %594 = vmatprep.subr.mxu0 0.0
        %595 = vmatpush2.msra.mxu0 0.0
        %596 = vmatprep.subr.mxu0 0.0
        %597 = vmatpush2.msra.mxu0 0.0
        %598 = vmatprep.subr.mxu0 0.0
        %599 = vmatpush2.msra.mxu0 0.0
        %600 = vmatprep.subr.mxu0 0.0
        %601 = vmatpush2.msra.mxu0 0.0
        %602 = vmatprep.subr.mxu0 0.0
        %603 = vmatpush2.msra.mxu0 0.0
        %604 = vmatprep.subr.mxu0 0.0
        %605 = vmatpush2.msra.mxu0 0.0
        %606 = vmatprep.subr.mxu0 0.0
        %607 = vmatpush2.msra.mxu0 0.0
        %608 = vmatprep.subr.mxu0 0.0
        %609 = vmatpush2.msra.mxu0 0.0
        %610 = vmatprep.subr.mxu0 0.0
        %611 = vmatpush2.msra.mxu0 0.0
        %612 = vmatprep.subr.mxu0 0.0
        %613 = vmatpush2.msra.mxu0 0.0
        %614 = vmatprep.subr.mxu0 0.0
        %615 = vmatpush2.msra.mxu0 0.0
        %616 = vmatprep.mubr.f32.mxu0 0.0
        %617 = vmatmul.mubr.f32.gmra.mxu0 %v415
        %v618 = vpop.f32.mrf.mxu0
        %v619 = vadd.f32 %v376, %v618
        %v620 = vpop.f32.mrf.mxu0
        %621 = vmatprep.mubr.f32.mxu0 0.0
        %622 = vmatmul.mubr.f32.gmra.mxu0 %v418
        %v623 = vpop.f32.mrf.mxu0
        %v624 = vadd.f32 %v381, %v623
        %v625 = vpop.f32.mrf.mxu0
        %626 = vmatprep.mubr.f32.mxu0 0.0
        %627 = vmatmul.mubr.f32.gmra.mxu0 %v421
        %v628 = vpop.f32.mrf.mxu0
        %v629 = vadd.f32 %v386, %v628
        %v630 = vpop.f32.mrf.mxu0
        %631 = vmatprep.mubr.f32.mxu0 0.0
        %632 = vmatmul.mubr.f32.gmra.mxu0 %v424
        %v633 = vpop.f32.mrf.mxu0
        %v634 = vadd.f32 %v391, %v633
        %v635 = vpop.f32.mrf.mxu0
        %636 = vmatprep.mubr.f32.mxu0 0.0
        %637 = vmatmul.mubr.f32.gmra.mxu0 %v427
        %v638 = vpop.f32.mrf.mxu0
        %v639 = vadd.f32 %v396, %v638
        %v640 = vpop.f32.mrf.mxu0
        %641 = vmatprep.mubr.f32.mxu0 0.0
        %642 = vmatmul.mubr.f32.gmra.mxu0 %v430
        %v643 = vpop.f32.mrf.mxu0
        %v644 = vadd.f32 %v401, %v643
        %v645 = vpop.f32.mrf.mxu0
        %646 = vmatprep.mubr.f32.mxu0 0.0
        %647 = vmatmul.mubr.f32.gmra.mxu0 %v433
        %v648 = vpop.f32.mrf.mxu0
        %v649 = vadd.f32 %v406, %v648
        %v650 = vpop.f32.mrf.mxu0
        %651 = vmatprep.mubr.f32.mxu0 0.0
        %652 = vmatmul.mubr.f32.gmra.mxu0 %v436
        %v653 = vpop.f32.mrf.mxu0
        %v654 = vadd.f32 %v411, %v653
        %v655 = vpop.f32.mrf.mxu0
        %656 = vdwg.mxu0
        %v657 = vld [vmem:[%s3] sm:$0xff]
        %v658 = vld [vmem:[%s3 + $0x8] sm:$0xff]
        %v659 = vld [vmem:[%s3 + $0x10] sm:$0xff]
        %v660 = vld [vmem:[%s3 + $0x18] sm:$0xff]
        %v661 = vld [vmem:[%s3 + $0x20] sm:$0xff]
        %v662 = vld [vmem:[%s3 + $0x28] sm:$0xff]
        %v663 = vld [vmem:[%s3 + $0x30] sm:$0xff]
        %v664 = vld [vmem:[%s3 + $0x38] sm:$0xff]
        %v665 = vld [vmem:[%s3 + $0x40] sm:$0xff]
        %v666 = vld [vmem:[%s3 + $0x48] sm:$0xff]
        %v667 = vld [vmem:[%s3 + $0x50] sm:$0xff]
        %v668 = vld [vmem:[%s3 + $0x58] sm:$0xff]
        %v669 = vld [vmem:[%s3 + $0x60] sm:$0xff]
        %v670 = vld [vmem:[%s3 + $0x68] sm:$0xff]
        %v671 = vld [vmem:[%s3 + $0x70] sm:$0xff]
        %v672 = vld [vmem:[%s3 + $0x78] sm:$0xff]
        %v673 = vld [vmem:[%s3 + $0x80] sm:$0xff]
        %v674 = vld [vmem:[%s3 + $0x88] sm:$0xff]
        %v675 = vld [vmem:[%s3 + $0x90] sm:$0xff]
        %v676 = vld [vmem:[%s3 + $0x98] sm:$0xff]
        %v677 = vld [vmem:[%s3 + $0xa0] sm:$0xff]
        %v678 = vld [vmem:[%s3 + $0xa8] sm:$0xff]
        %v679 = vld [vmem:[%s3 + $0xb0] sm:$0xff]
        %v680 = vld [vmem:[%s3 + $0xb8] sm:$0xff]
        %v681 = vld [vmem:[%s3 + $0xc0] sm:$0xff]
        %v682 = vld [vmem:[%s3 + $0xc8] sm:$0xff]
        %v683 = vld [vmem:[%s3 + $0xd0] sm:$0xff]
        %v684 = vld [vmem:[%s3 + $0xd8] sm:$0xff]
        %v685 = vld [vmem:[%s3 + $0xe0] sm:$0xff]
        %v686 = vld [vmem:[%s3 + $0xe8] sm:$0xff]
        %v687 = vld [vmem:[%s3 + $0xf0] sm:$0xff]
        %v688 = vld [vmem:[%s3 + $0xf8] sm:$0xff]
        %v689 = vld [vmem:[%s3 + $0x100] sm:$0xff]
        %v690 = vld [vmem:[%s3 + $0x108] sm:$0xff]
        %v691 = vld [vmem:[%s3 + $0x110] sm:$0xff]
        %v692 = vld [vmem:[%s3 + $0x118] sm:$0xff]
        %v693 = vld [vmem:[%s3 + $0x120] sm:$0xff]
        %v694 = vld [vmem:[%s3 + $0x128] sm:$0xff]
        %v695 = vld [vmem:[%s3 + $0x130] sm:$0xff]
        %v696 = vld [vmem:[%s3 + $0x138] sm:$0xff]
        %v697 = vld [vmem:[%s3 + $0x140] sm:$0xff]
        %v698 = vld [vmem:[%s3 + $0x148] sm:$0xff]
        %v699 = vld [vmem:[%s3 + $0x150] sm:$0xff]
        %v700 = vld [vmem:[%s3 + $0x158] sm:$0xff]
        %v701 = vld [vmem:[%s3 + $0x160] sm:$0xff]
        %v702 = vld [vmem:[%s3 + $0x168] sm:$0xff]
        %v703 = vld [vmem:[%s3 + $0x170] sm:$0xff]
        %v704 = vld [vmem:[%s3 + $0x178] sm:$0xff]
        %v705 = vld [vmem:[%s4] sm:$0x7]
        %v707 = vlaneseq
        %v708 = vshrl.u32 %v707, 7
        %v709 = vsub.s32 0, %v708
        %v710 = vrot.slane %v705, %v709
        %v711 = vlaneseq
        %v712 = vshrl.u32 %v711, 7
        %v713 = vsub.s32 1, %v712
        %v714 = vrot.slane %v705, %v713
        %v715 = vlaneseq
        %v716 = vshrl.u32 %v715, 7
        %v717 = vsub.s32 2, %v716
        %v718 = vrot.slane %v705, %v717
        %722 = vmatprep.subr.mxu0 %v703
        %723 = vmatpush1.msra.mxu0 %v702
        %724 = vmatprep.subr.mxu0 %v700
        %725 = vmatpush1.msra.mxu0 %v699
        %726 = vmatprep.subr.mxu0 %v697
        %727 = vmatpush1.msra.mxu0 %v696
        %728 = vmatprep.subr.mxu0 %v694
        %729 = vmatpush1.msra.mxu0 %v693
        %730 = vmatprep.subr.mxu0 %v691
        %731 = vmatpush1.msra.mxu0 %v690
        %732 = vmatprep.subr.mxu0 %v688
        %733 = vmatpush1.msra.mxu0 %v687
        %734 = vmatprep.subr.mxu0 %v685
        %735 = vmatpush1.msra.mxu0 %v684
        %736 = vmatprep.subr.mxu0 %v682
        %737 = vmatpush1.msra.mxu0 %v681
        %738 = vmatprep.subr.mxu0 %v679
        %739 = vmatpush1.msra.mxu0 %v678
        %740 = vmatprep.subr.mxu0 %v676
        %741 = vmatpush1.msra.mxu0 %v675
        %742 = vmatprep.subr.mxu0 %v673
        %743 = vmatpush1.msra.mxu0 %v672
        %744 = vmatprep.subr.mxu0 %v670
        %745 = vmatpush1.msra.mxu0 %v669
        %746 = vmatprep.subr.mxu0 %v667
        %747 = vmatpush1.msra.mxu0 %v666
        %748 = vmatprep.subr.mxu0 %v664
        %749 = vmatpush1.msra.mxu0 %v663
        %750 = vmatprep.subr.mxu0 %v661
        %751 = vmatpush1.msra.mxu0 %v660
        %752 = vmatprep.subr.mxu0 %v658
        %753 = vmatpush1.msra.mxu0 %v657
        %754 = vmatprep.subr.mxu0 0.0
        %755 = vmatpush2.msra.mxu0 0.0
        %756 = vmatprep.subr.mxu0 0.0
        %757 = vmatpush2.msra.mxu0 0.0
        %758 = vmatprep.subr.mxu0 0.0
        %759 = vmatpush2.msra.mxu0 0.0
        %760 = vmatprep.subr.mxu0 0.0
        %761 = vmatpush2.msra.mxu0 0.0
        %762 = vmatprep.subr.mxu0 0.0
        %763 = vmatpush2.msra.mxu0 0.0
        %764 = vmatprep.subr.mxu0 0.0
        %765 = vmatpush2.msra.mxu0 0.0
        %766 = vmatprep.subr.mxu0 0.0
        %767 = vmatpush2.msra.mxu0 0.0
        %768 = vmatprep.subr.mxu0 0.0
        %769 = vmatpush2.msra.mxu0 0.0
        %770 = vmatprep.subr.mxu0 0.0
        %771 = vmatpush2.msra.mxu0 0.0
        %772 = vmatprep.subr.mxu0 0.0
        %773 = vmatpush2.msra.mxu0 0.0
        %774 = vmatprep.subr.mxu0 0.0
        %775 = vmatpush2.msra.mxu0 0.0
        %776 = vmatprep.subr.mxu0 0.0
        %777 = vmatpush2.msra.mxu0 0.0
        %778 = vmatprep.subr.mxu0 0.0
        %779 = vmatpush2.msra.mxu0 0.0
        %780 = vmatprep.subr.mxu0 0.0
        %781 = vmatpush2.msra.mxu0 0.0
        %782 = vmatprep.subr.mxu0 0.0
        %783 = vmatpush2.msra.mxu0 0.0
        %784 = vmatprep.subr.mxu0 0.0
        %785 = vmatpush2.msra.mxu0 0.0
        %786 = vmatprep.mubr.f32.mxu0 0.0
        %787 = vmatmul.mubr.f32.gmra.mxu0 %v509
        %v788 = vpop.f32.mrf.mxu0
        %v789 = vadd.f32 %v710, %v788
        %v790 = vpop.f32.mrf.mxu0
        %v791 = vadd.f32 %v714, %v790
        %792 = vmatprep.mubr.f32.mxu0 0.0
        %793 = vmatmul.mubr.f32.gmra.mxu0 %v514
        %v794 = vpop.f32.mrf.mxu0
        %v795 = vadd.f32 %v710, %v794
        %v796 = vpop.f32.mrf.mxu0
        %v797 = vadd.f32 %v714, %v796
        %798 = vmatprep.mubr.f32.mxu0 0.0
        %799 = vmatmul.mubr.f32.gmra.mxu0 %v519
        %v800 = vpop.f32.mrf.mxu0
        %v801 = vadd.f32 %v710, %v800
        %v802 = vpop.f32.mrf.mxu0
        %v803 = vadd.f32 %v714, %v802
        %804 = vmatprep.mubr.f32.mxu0 0.0
        %805 = vmatmul.mubr.f32.gmra.mxu0 %v524
        %v806 = vpop.f32.mrf.mxu0
        %v807 = vadd.f32 %v710, %v806
        %v808 = vpop.f32.mrf.mxu0
        %v809 = vadd.f32 %v714, %v808
        %810 = vmatprep.mubr.f32.mxu0 0.0
        %811 = vmatmul.mubr.f32.gmra.mxu0 %v529
        %v812 = vpop.f32.mrf.mxu0
        %v813 = vadd.f32 %v710, %v812
        %v814 = vpop.f32.mrf.mxu0
        %v815 = vadd.f32 %v714, %v814
        %816 = vmatprep.mubr.f32.mxu0 0.0
        %817 = vmatmul.mubr.f32.gmra.mxu0 %v534
        %v818 = vpop.f32.mrf.mxu0
        %v819 = vadd.f32 %v710, %v818
        %v820 = vpop.f32.mrf.mxu0
        %v821 = vadd.f32 %v714, %v820
        %822 = vmatprep.mubr.f32.mxu0 0.0
        %823 = vmatmul.mubr.f32.gmra.mxu0 %v539
        %v824 = vpop.f32.mrf.mxu0
        %v825 = vadd.f32 %v710, %v824
        %v826 = vpop.f32.mrf.mxu0
        %v827 = vadd.f32 %v714, %v826
        %828 = vmatprep.mubr.f32.mxu0 0.0
        %829 = vmatmul.mubr.f32.gmra.mxu0 %v544
        %v830 = vpop.f32.mrf.mxu0
        %v831 = vadd.f32 %v710, %v830
        %v832 = vpop.f32.mrf.mxu0
        %v833 = vadd.f32 %v714, %v832
        %834 = vmatprep.mubr.f32.mxu0 0.0
        %835 = vmatmul.mubr.f32.gmra.mxu0 %v619
        %v836 = vpop.f32.mrf.mxu0
        %v837 = vadd.f32 %v710, %v836
        %v838 = vpop.f32.mrf.mxu0
        %v839 = vadd.f32 %v714, %v838
        %840 = vmatprep.mubr.f32.mxu0 0.0
        %841 = vmatmul.mubr.f32.gmra.mxu0 %v624
        %v842 = vpop.f32.mrf.mxu0
        %v843 = vadd.f32 %v710, %v842
        %v844 = vpop.f32.mrf.mxu0
        %v845 = vadd.f32 %v714, %v844
        %846 = vmatprep.mubr.f32.mxu0 0.0
        %847 = vmatmul.mubr.f32.gmra.mxu0 %v629
        %v848 = vpop.f32.mrf.mxu0
        %v849 = vadd.f32 %v710, %v848
        %v850 = vpop.f32.mrf.mxu0
        %v851 = vadd.f32 %v714, %v850
        %852 = vmatprep.mubr.f32.mxu0 0.0
        %853 = vmatmul.mubr.f32.gmra.mxu0 %v634
        %v854 = vpop.f32.mrf.mxu0
        %v855 = vadd.f32 %v710, %v854
        %v856 = vpop.f32.mrf.mxu0
        %v857 = vadd.f32 %v714, %v856
        %858 = vmatprep.mubr.f32.mxu0 0.0
        %859 = vmatmul.mubr.f32.gmra.mxu0 %v639
        %v860 = vpop.f32.mrf.mxu0
        %v861 = vadd.f32 %v710, %v860
        %v862 = vpop.f32.mrf.mxu0
        %v863 = vadd.f32 %v714, %v862
        %864 = vmatprep.mubr.f32.mxu0 0.0
        %865 = vmatmul.mubr.f32.gmra.mxu0 %v644
        %v866 = vpop.f32.mrf.mxu0
        %v867 = vadd.f32 %v710, %v866
        %v868 = vpop.f32.mrf.mxu0
        %v869 = vadd.f32 %v714, %v868
        %870 = vmatprep.mubr.f32.mxu0 0.0
        %871 = vmatmul.mubr.f32.gmra.mxu0 %v649
        %v872 = vpop.f32.mrf.mxu0
        %v873 = vadd.f32 %v710, %v872
        %v874 = vpop.f32.mrf.mxu0
        %v875 = vadd.f32 %v714, %v874
        %876 = vmatprep.mubr.f32.mxu0 0.0
        %877 = vmatmul.mubr.f32.gmra.mxu0 %v654
        %v878 = vpop.f32.mrf.mxu0
        %v879 = vadd.f32 %v710, %v878
        %v880 = vpop.f32.mrf.mxu0
        %v881 = vadd.f32 %v714, %v880
        %882 = vdwg.mxu0
        %883 = vmatprep.subr.mxu0 0.0
        %884 = vmatpush1.msra.mxu0 %v704
        %885 = vmatprep.subr.mxu0 0.0
        %886 = vmatpush1.msra.mxu0 %v701
        %887 = vmatprep.subr.mxu0 0.0
        %888 = vmatpush1.msra.mxu0 %v698
        %889 = vmatprep.subr.mxu0 0.0
        %890 = vmatpush1.msra.mxu0 %v695
        %891 = vmatprep.subr.mxu0 0.0
        %892 = vmatpush1.msra.mxu0 %v692
        %893 = vmatprep.subr.mxu0 0.0
        %894 = vmatpush1.msra.mxu0 %v689
        %895 = vmatprep.subr.mxu0 0.0
        %896 = vmatpush1.msra.mxu0 %v686
        %897 = vmatprep.subr.mxu0 0.0
        %898 = vmatpush1.msra.mxu0 %v683
        %899 = vmatprep.subr.mxu0 0.0
        %900 = vmatpush1.msra.mxu0 %v680
        %901 = vmatprep.subr.mxu0 0.0
        %902 = vmatpush1.msra.mxu0 %v677
        %903 = vmatprep.subr.mxu0 0.0
        %904 = vmatpush1.msra.mxu0 %v674
        %905 = vmatprep.subr.mxu0 0.0
        %906 = vmatpush1.msra.mxu0 %v671
        %907 = vmatprep.subr.mxu0 0.0
        %908 = vmatpush1.msra.mxu0 %v668
        %909 = vmatprep.subr.mxu0 0.0
        %910 = vmatpush1.msra.mxu0 %v665
        %911 = vmatprep.subr.mxu0 0.0
        %912 = vmatpush1.msra.mxu0 %v662
        %913 = vmatprep.subr.mxu0 0.0
        %914 = vmatpush1.msra.mxu0 %v659
        %915 = vmatprep.subr.mxu0 0.0
        %916 = vmatpush2.msra.mxu0 0.0
        %917 = vmatprep.subr.mxu0 0.0
        %918 = vmatpush2.msra.mxu0 0.0
        %919 = vmatprep.subr.mxu0 0.0
        %920 = vmatpush2.msra.mxu0 0.0
        %921 = vmatprep.subr.mxu0 0.0
        %922 = vmatpush2.msra.mxu0 0.0
        %923 = vmatprep.subr.mxu0 0.0
        %924 = vmatpush2.msra.mxu0 0.0
        %925 = vmatprep.subr.mxu0 0.0
        %926 = vmatpush2.msra.mxu0 0.0
        %927 = vmatprep.subr.mxu0 0.0
        %928 = vmatpush2.msra.mxu0 0.0
        %929 = vmatprep.subr.mxu0 0.0
        %930 = vmatpush2.msra.mxu0 0.0
        %931 = vmatprep.subr.mxu0 0.0
        %932 = vmatpush2.msra.mxu0 0.0
        %933 = vmatprep.subr.mxu0 0.0
        %934 = vmatpush2.msra.mxu0 0.0
        %935 = vmatprep.subr.mxu0 0.0
        %936 = vmatpush2.msra.mxu0 0.0
        %937 = vmatprep.subr.mxu0 0.0
        %938 = vmatpush2.msra.mxu0 0.0
        %939 = vmatprep.subr.mxu0 0.0
        %940 = vmatpush2.msra.mxu0 0.0
        %941 = vmatprep.subr.mxu0 0.0
        %942 = vmatpush2.msra.mxu0 0.0
        %943 = vmatprep.subr.mxu0 0.0
        %944 = vmatpush2.msra.mxu0 0.0
        %945 = vmatprep.subr.mxu0 0.0
        %946 = vmatpush2.msra.mxu0 0.0
        %947 = vmatprep.mubr.f32.mxu0 0.0
        %948 = vmatmul.mubr.f32.gmra.mxu0 %v509
        %v949 = vpop.f32.mrf.mxu0
        %v950 = vadd.f32 %v718, %v949
        %v951 = vpop.f32.mrf.mxu0
        %952 = vmatprep.mubr.f32.mxu0 0.0
        %953 = vmatmul.mubr.f32.gmra.mxu0 %v514
        %v954 = vpop.f32.mrf.mxu0
        %v955 = vadd.f32 %v718, %v954
        %v956 = vpop.f32.mrf.mxu0
        %957 = vmatprep.mubr.f32.mxu0 0.0
        %958 = vmatmul.mubr.f32.gmra.mxu0 %v519
        %v959 = vpop.f32.mrf.mxu0
        %v960 = vadd.f32 %v718, %v959
        %v961 = vpop.f32.mrf.mxu0
        %962 = vmatprep.mubr.f32.mxu0 0.0
        %963 = vmatmul.mubr.f32.gmra.mxu0 %v524
        %v964 = vpop.f32.mrf.mxu0
        %v965 = vadd.f32 %v718, %v964
        %v966 = vpop.f32.mrf.mxu0
        %967 = vmatprep.mubr.f32.mxu0 0.0
        %968 = vmatmul.mubr.f32.gmra.mxu0 %v529
        %v969 = vpop.f32.mrf.mxu0
        %v970 = vadd.f32 %v718, %v969
        %v971 = vpop.f32.mrf.mxu0
        %972 = vmatprep.mubr.f32.mxu0 0.0
        %973 = vmatmul.mubr.f32.gmra.mxu0 %v534
        %v974 = vpop.f32.mrf.mxu0
        %v975 = vadd.f32 %v718, %v974
        %v976 = vpop.f32.mrf.mxu0
        %977 = vmatprep.mubr.f32.mxu0 0.0
        %978 = vmatmul.mubr.f32.gmra.mxu0 %v539
        %v979 = vpop.f32.mrf.mxu0
        %v980 = vadd.f32 %v718, %v979
        %v981 = vpop.f32.mrf.mxu0
        %982 = vmatprep.mubr.f32.mxu0 0.0
        %983 = vmatmul.mubr.f32.gmra.mxu0 %v544
        %v984 = vpop.f32.mrf.mxu0
        %v985 = vadd.f32 %v718, %v984
        %v986 = vpop.f32.mrf.mxu0
        %987 = vmatprep.mubr.f32.mxu0 0.0
        %988 = vmatmul.mubr.f32.gmra.mxu0 %v619
        %v989 = vpop.f32.mrf.mxu0
        %v990 = vadd.f32 %v718, %v989
        %v991 = vpop.f32.mrf.mxu0
        %992 = vmatprep.mubr.f32.mxu0 0.0
        %993 = vmatmul.mubr.f32.gmra.mxu0 %v624
        %v994 = vpop.f32.mrf.mxu0
        %v995 = vadd.f32 %v718, %v994
        %v996 = vpop.f32.mrf.mxu0
        %997 = vmatprep.mubr.f32.mxu0 0.0
        %998 = vmatmul.mubr.f32.gmra.mxu0 %v629
        %v999 = vpop.f32.mrf.mxu0
        %v1000 = vadd.f32 %v718, %v999
        %v1001 = vpop.f32.mrf.mxu0
        %1002 = vmatprep.mubr.f32.mxu0 0.0
        %1003 = vmatmul.mubr.f32.gmra.mxu0 %v634
        %v1004 = vpop.f32.mrf.mxu0
        %v1005 = vadd.f32 %v718, %v1004
        %v1006 = vpop.f32.mrf.mxu0
        %1007 = vmatprep.mubr.f32.mxu0 0.0
        %1008 = vmatmul.mubr.f32.gmra.mxu0 %v639
        %v1009 = vpop.f32.mrf.mxu0
        %v1010 = vadd.f32 %v718, %v1009
        %v1011 = vpop.f32.mrf.mxu0
        %1012 = vmatprep.mubr.f32.mxu0 0.0
        %1013 = vmatmul.mubr.f32.gmra.mxu0 %v644
        %v1014 = vpop.f32.mrf.mxu0
        %v1015 = vadd.f32 %v718, %v1014
        %v1016 = vpop.f32.mrf.mxu0
        %1017 = vmatprep.mubr.f32.mxu0 0.0
        %1018 = vmatmul.mubr.f32.gmra.mxu0 %v649
        %v1019 = vpop.f32.mrf.mxu0
        %v1020 = vadd.f32 %v718, %v1019
        %v1021 = vpop.f32.mrf.mxu0
        %1022 = vmatprep.mubr.f32.mxu0 0.0
        %1023 = vmatmul.mubr.f32.gmra.mxu0 %v654
        %v1024 = vpop.f32.mrf.mxu0
        %v1025 = vadd.f32 %v718, %v1024
        %v1026 = vpop.f32.mrf.mxu0
        %1027 = vdwg.mxu0
        %v1028 = vmul.f32 %v789, %v791
        %v1029 = vmul.f32 %v795, %v797
        %v1030 = vmul.f32 %v801, %v803
        %v1031 = vmul.f32 %v807, %v809
        %v1032 = vmul.f32 %v813, %v815
        %v1033 = vmul.f32 %v819, %v821
        %v1034 = vmul.f32 %v825, %v827
        %v1035 = vmul.f32 %v831, %v833
        %v1036 = vmul.f32 %v789, %v839
        %v1037 = vmul.f32 %v795, %v845
        %v1038 = vmul.f32 %v801, %v851
        %v1039 = vmul.f32 %v807, %v857
        %v1040 = vmul.f32 %v813, %v863
        %v1041 = vmul.f32 %v819, %v869
        %v1042 = vmul.f32 %v825, %v875
        %v1043 = vmul.f32 %v831, %v881
        %v1044 = vmul.f32 %v837, %v791
        %v1045 = vmul.f32 %v843, %v797
        %v1046 = vmul.f32 %v849, %v803
        %v1047 = vmul.f32 %v855, %v809
        %v1048 = vmul.f32 %v861, %v815
        %v1049 = vmul.f32 %v867, %v821
        %v1050 = vmul.f32 %v873, %v827
        %v1051 = vmul.f32 %v879, %v833
        %v1052 = vmul.f32 %v837, %v839
        %v1053 = vmul.f32 %v843, %v845
        %v1054 = vmul.f32 %v849, %v851
        %v1055 = vmul.f32 %v855, %v857
        %v1056 = vmul.f32 %v861, %v863
        %v1057 = vmul.f32 %v867, %v869
        %v1058 = vmul.f32 %v873, %v875
        %v1059 = vmul.f32 %v879, %v881
        %v1060 = vld [vmem:[%s7] sm:$0xff]
        %v1061 = vld [vmem:[%s7 + $0x8] sm:$0xff]
        %v1062 = vld [vmem:[%s7 + $0x10] sm:$0xff]
        %v1063 = vld [vmem:[%s7 + $0x18] sm:$0xff]
        %v1064 = vld [vmem:[%s7 + $0x20] sm:$0xff]
        %v1065 = vld [vmem:[%s7 + $0x28] sm:$0xff]
        %v1066 = vld [vmem:[%s7 + $0x30] sm:$0xff]
        %v1067 = vld [vmem:[%s7 + $0x38] sm:$0xff]
        %v1068 = vld [vmem:[%s7 + $0x40] sm:$0xff]
        %v1069 = vld [vmem:[%s7 + $0x48] sm:$0xff]
        %v1070 = vld [vmem:[%s7 + $0x50] sm:$0xff]
        %v1071 = vld [vmem:[%s7 + $0x58] sm:$0xff]
        %v1072 = vld [vmem:[%s7 + $0x60] sm:$0xff]
        %v1073 = vld [vmem:[%s7 + $0x68] sm:$0xff]
        %v1074 = vld [vmem:[%s7 + $0x70] sm:$0xff]
        %v1075 = vld [vmem:[%s7 + $0x78] sm:$0xff]
        %1076 = vmatprep.subr.mxu0 0.0
        %1077 = vmatpush1.msra.mxu0 %v1075
        %1078 = vmatprep.subr.mxu0 0.0
        %1079 = vmatpush1.msra.mxu0 %v1074
        %1080 = vmatprep.subr.mxu0 0.0
        %1081 = vmatpush1.msra.mxu0 %v1073
        %1082 = vmatprep.subr.mxu0 0.0
        %1083 = vmatpush1.msra.mxu0 %v1072
        %1084 = vmatprep.subr.mxu0 0.0
        %1085 = vmatpush1.msra.mxu0 %v1071
        %1086 = vmatprep.subr.mxu0 0.0
        %1087 = vmatpush1.msra.mxu0 %v1070
        %1088 = vmatprep.subr.mxu0 0.0
        %1089 = vmatpush1.msra.mxu0 %v1069
        %1090 = vmatprep.subr.mxu0 0.0
        %1091 = vmatpush1.msra.mxu0 %v1068
        %1092 = vmatprep.subr.mxu0 0.0
        %1093 = vmatpush1.msra.mxu0 %v1067
        %1094 = vmatprep.subr.mxu0 0.0
        %1095 = vmatpush1.msra.mxu0 %v1066
        %1096 = vmatprep.subr.mxu0 0.0
        %1097 = vmatpush1.msra.mxu0 %v1065
        %1098 = vmatprep.subr.mxu0 0.0
        %1099 = vmatpush1.msra.mxu0 %v1064
        %1100 = vmatprep.subr.mxu0 0.0
        %1101 = vmatpush1.msra.mxu0 %v1063
        %1102 = vmatprep.subr.mxu0 0.0
        %1103 = vmatpush1.msra.mxu0 %v1062
        %1104 = vmatprep.subr.mxu0 0.0
        %1105 = vmatpush1.msra.mxu0 %v1061
        %1106 = vmatprep.subr.mxu0 0.0
        %1107 = vmatpush1.msra.mxu0 %v1060
        %1108 = vmatprep.subr.mxu0 0.0
        %1109 = vmatpush2.msra.mxu0 0.0
        %1110 = vmatprep.subr.mxu0 0.0
        %1111 = vmatpush2.msra.mxu0 0.0
        %1112 = vmatprep.subr.mxu0 0.0
        %1113 = vmatpush2.msra.mxu0 0.0
        %1114 = vmatprep.subr.mxu0 0.0
        %1115 = vmatpush2.msra.mxu0 0.0
        %1116 = vmatprep.subr.mxu0 0.0
        %1117 = vmatpush2.msra.mxu0 0.0
        %1118 = vmatprep.subr.mxu0 0.0
        %1119 = vmatpush2.msra.mxu0 0.0
        %1120 = vmatprep.subr.mxu0 0.0
        %1121 = vmatpush2.msra.mxu0 0.0
        %1122 = vmatprep.subr.mxu0 0.0
        %1123 = vmatpush2.msra.mxu0 0.0
        %1124 = vmatprep.subr.mxu0 0.0
        %1125 = vmatpush2.msra.mxu0 0.0
        %1126 = vmatprep.subr.mxu0 0.0
        %1127 = vmatpush2.msra.mxu0 0.0
        %1128 = vmatprep.subr.mxu0 0.0
        %1129 = vmatpush2.msra.mxu0 0.0
        %1130 = vmatprep.subr.mxu0 0.0
        %1131 = vmatpush2.msra.mxu0 0.0
        %1132 = vmatprep.subr.mxu0 0.0
        %1133 = vmatpush2.msra.mxu0 0.0
        %1134 = vmatprep.subr.mxu0 0.0
        %1135 = vmatpush2.msra.mxu0 0.0
        %1136 = vmatprep.subr.mxu0 0.0
        %1137 = vmatpush2.msra.mxu0 0.0
        %1138 = vmatprep.subr.mxu0 0.0
        %1139 = vmatpush2.msra.mxu0 0.0
        %1140 = vmatprep.mubr.f32.mxu0 0.0
        %1141 = vmatmul.mubr.f32.gmra.mxu0 %v1028
        %v1142 = vpop.f32.mrf.mxu0
        %v1143 = vadd.f32 0.0, %v1142
        %v1144 = vpop.f32.mrf.mxu0
        %1145 = vmatprep.mubr.f32.mxu0 0.0
        %1146 = vmatmul.mubr.f32.gmra.mxu0 %v1029
        %v1147 = vpop.f32.mrf.mxu0
        %v1148 = vadd.f32 0.0, %v1147
        %v1149 = vpop.f32.mrf.mxu0
        %1150 = vmatprep.mubr.f32.mxu0 0.0
        %1151 = vmatmul.mubr.f32.gmra.mxu0 %v1030
        %v1152 = vpop.f32.mrf.mxu0
        %v1153 = vadd.f32 0.0, %v1152
        %v1154 = vpop.f32.mrf.mxu0
        %1155 = vmatprep.mubr.f32.mxu0 0.0
        %1156 = vmatmul.mubr.f32.gmra.mxu0 %v1031
        %v1157 = vpop.f32.mrf.mxu0
        %v1158 = vadd.f32 0.0, %v1157
        %v1159 = vpop.f32.mrf.mxu0
        %1160 = vmatprep.mubr.f32.mxu0 0.0
        %1161 = vmatmul.mubr.f32.gmra.mxu0 %v1032
        %v1162 = vpop.f32.mrf.mxu0
        %v1163 = vadd.f32 0.0, %v1162
        %v1164 = vpop.f32.mrf.mxu0
        %1165 = vmatprep.mubr.f32.mxu0 0.0
        %1166 = vmatmul.mubr.f32.gmra.mxu0 %v1033
        %v1167 = vpop.f32.mrf.mxu0
        %v1168 = vadd.f32 0.0, %v1167
        %v1169 = vpop.f32.mrf.mxu0
        %1170 = vmatprep.mubr.f32.mxu0 0.0
        %1171 = vmatmul.mubr.f32.gmra.mxu0 %v1034
        %v1172 = vpop.f32.mrf.mxu0
        %v1173 = vadd.f32 0.0, %v1172
        %v1174 = vpop.f32.mrf.mxu0
        %1175 = vmatprep.mubr.f32.mxu0 0.0
        %1176 = vmatmul.mubr.f32.gmra.mxu0 %v1035
        %v1177 = vpop.f32.mrf.mxu0
        %v1178 = vadd.f32 0.0, %v1177
        %v1179 = vpop.f32.mrf.mxu0
        %1180 = vmatprep.mubr.f32.mxu0 0.0
        %1181 = vmatmul.mubr.f32.gmra.mxu0 %v1036
        %v1182 = vpop.f32.mrf.mxu0
        %v1183 = vadd.f32 0.0, %v1182
        %v1184 = vpop.f32.mrf.mxu0
        %1185 = vmatprep.mubr.f32.mxu0 0.0
        %1186 = vmatmul.mubr.f32.gmra.mxu0 %v1037
        %v1187 = vpop.f32.mrf.mxu0
        %v1188 = vadd.f32 0.0, %v1187
        %v1189 = vpop.f32.mrf.mxu0
        %1190 = vmatprep.mubr.f32.mxu0 0.0
        %1191 = vmatmul.mubr.f32.gmra.mxu0 %v1038
        %v1192 = vpop.f32.mrf.mxu0
        %v1193 = vadd.f32 0.0, %v1192
        %v1194 = vpop.f32.mrf.mxu0
        %1195 = vmatprep.mubr.f32.mxu0 0.0
        %1196 = vmatmul.mubr.f32.gmra.mxu0 %v1039
        %v1197 = vpop.f32.mrf.mxu0
        %v1198 = vadd.f32 0.0, %v1197
        %v1199 = vpop.f32.mrf.mxu0
        %1200 = vmatprep.mubr.f32.mxu0 0.0
        %1201 = vmatmul.mubr.f32.gmra.mxu0 %v1040
        %v1202 = vpop.f32.mrf.mxu0
        %v1203 = vadd.f32 0.0, %v1202
        %v1204 = vpop.f32.mrf.mxu0
        %1205 = vmatprep.mubr.f32.mxu0 0.0
        %1206 = vmatmul.mubr.f32.gmra.mxu0 %v1041
        %v1207 = vpop.f32.mrf.mxu0
        %v1208 = vadd.f32 0.0, %v1207
        %v1209 = vpop.f32.mrf.mxu0
        %1210 = vmatprep.mubr.f32.mxu0 0.0
        %1211 = vmatmul.mubr.f32.gmra.mxu0 %v1042
        %v1212 = vpop.f32.mrf.mxu0
        %v1213 = vadd.f32 0.0, %v1212
        %v1214 = vpop.f32.mrf.mxu0
        %1215 = vmatprep.mubr.f32.mxu0 0.0
        %1216 = vmatmul.mubr.f32.gmra.mxu0 %v1043
        %v1217 = vpop.f32.mrf.mxu0
        %v1218 = vadd.f32 0.0, %v1217
        %v1219 = vpop.f32.mrf.mxu0
        %1220 = vmatprep.mubr.f32.mxu0 0.0
        %1221 = vmatmul.mubr.f32.gmra.mxu0 %v1044
        %v1222 = vpop.f32.mrf.mxu0
        %v1223 = vadd.f32 0.0, %v1222
        %v1224 = vpop.f32.mrf.mxu0
        %1225 = vmatprep.mubr.f32.mxu0 0.0
        %1226 = vmatmul.mubr.f32.gmra.mxu0 %v1045
        %v1227 = vpop.f32.mrf.mxu0
        %v1228 = vadd.f32 0.0, %v1227
        %v1229 = vpop.f32.mrf.mxu0
        %1230 = vmatprep.mubr.f32.mxu0 0.0
        %1231 = vmatmul.mubr.f32.gmra.mxu0 %v1046
        %v1232 = vpop.f32.mrf.mxu0
        %v1233 = vadd.f32 0.0, %v1232
        %v1234 = vpop.f32.mrf.mxu0
        %1235 = vmatprep.mubr.f32.mxu0 0.0
        %1236 = vmatmul.mubr.f32.gmra.mxu0 %v1047
        %v1237 = vpop.f32.mrf.mxu0
        %v1238 = vadd.f32 0.0, %v1237
        %v1239 = vpop.f32.mrf.mxu0
        %1240 = vmatprep.mubr.f32.mxu0 0.0
        %1241 = vmatmul.mubr.f32.gmra.mxu0 %v1048
        %v1242 = vpop.f32.mrf.mxu0
        %v1243 = vadd.f32 0.0, %v1242
        %v1244 = vpop.f32.mrf.mxu0
        %1245 = vmatprep.mubr.f32.mxu0 0.0
        %1246 = vmatmul.mubr.f32.gmra.mxu0 %v1049
        %v1247 = vpop.f32.mrf.mxu0
        %v1248 = vadd.f32 0.0, %v1247
        %v1249 = vpop.f32.mrf.mxu0
        %1250 = vmatprep.mubr.f32.mxu0 0.0
        %1251 = vmatmul.mubr.f32.gmra.mxu0 %v1050
        %v1252 = vpop.f32.mrf.mxu0
        %v1253 = vadd.f32 0.0, %v1252
        %v1254 = vpop.f32.mrf.mxu0
        %1255 = vmatprep.mubr.f32.mxu0 0.0
        %1256 = vmatmul.mubr.f32.gmra.mxu0 %v1051
        %v1257 = vpop.f32.mrf.mxu0
        %v1258 = vadd.f32 0.0, %v1257
        %v1259 = vpop.f32.mrf.mxu0
        %1260 = vmatprep.mubr.f32.mxu0 0.0
        %1261 = vmatmul.mubr.f32.gmra.mxu0 %v1052
        %v1262 = vpop.f32.mrf.mxu0
        %v1263 = vadd.f32 0.0, %v1262
        %v1264 = vpop.f32.mrf.mxu0
        %1265 = vmatprep.mubr.f32.mxu0 0.0
        %1266 = vmatmul.mubr.f32.gmra.mxu0 %v1053
        %v1267 = vpop.f32.mrf.mxu0
        %v1268 = vadd.f32 0.0, %v1267
        %v1269 = vpop.f32.mrf.mxu0
        %1270 = vmatprep.mubr.f32.mxu0 0.0
        %1271 = vmatmul.mubr.f32.gmra.mxu0 %v1054
        %v1272 = vpop.f32.mrf.mxu0
        %v1273 = vadd.f32 0.0, %v1272
        %v1274 = vpop.f32.mrf.mxu0
        %1275 = vmatprep.mubr.f32.mxu0 0.0
        %1276 = vmatmul.mubr.f32.gmra.mxu0 %v1055
        %v1277 = vpop.f32.mrf.mxu0
        %v1278 = vadd.f32 0.0, %v1277
        %v1279 = vpop.f32.mrf.mxu0
        %1280 = vmatprep.mubr.f32.mxu0 0.0
        %1281 = vmatmul.mubr.f32.gmra.mxu0 %v1056
        %v1282 = vpop.f32.mrf.mxu0
        %v1283 = vadd.f32 0.0, %v1282
        %v1284 = vpop.f32.mrf.mxu0
        %1285 = vmatprep.mubr.f32.mxu0 0.0
        %1286 = vmatmul.mubr.f32.gmra.mxu0 %v1057
        %v1287 = vpop.f32.mrf.mxu0
        %v1288 = vadd.f32 0.0, %v1287
        %v1289 = vpop.f32.mrf.mxu0
        %1290 = vmatprep.mubr.f32.mxu0 0.0
        %1291 = vmatmul.mubr.f32.gmra.mxu0 %v1058
        %v1292 = vpop.f32.mrf.mxu0
        %v1293 = vadd.f32 0.0, %v1292
        %v1294 = vpop.f32.mrf.mxu0
        %1295 = vmatprep.mubr.f32.mxu0 0.0
        %1296 = vmatmul.mubr.f32.gmra.mxu0 %v1059
        %v1297 = vpop.f32.mrf.mxu0
        %v1298 = vadd.f32 0.0, %v1297
        %v1299 = vpop.f32.mrf.mxu0
        %1300 = vdwg.mxu0
        %v1301 = vmul.f32 %v1143, 0.25
        %v1302 = vmul.f32 %v1148, 0.25
        %v1303 = vmul.f32 %v1153, 0.25
        %v1304 = vmul.f32 %v1158, 0.25
        %v1305 = vmul.f32 %v1163, 0.25
        %v1306 = vmul.f32 %v1168, 0.25
        %v1307 = vmul.f32 %v1173, 0.25
        %v1308 = vmul.f32 %v1178, 0.25
        %v1309 = vmul.f32 %v1183, 0.25
        %v1310 = vmul.f32 %v1188, 0.25
        %v1311 = vmul.f32 %v1193, 0.25
        %v1312 = vmul.f32 %v1198, 0.25
        %v1313 = vmul.f32 %v1203, 0.25
        %v1314 = vmul.f32 %v1208, 0.25
        %v1315 = vmul.f32 %v1213, 0.25
        %v1316 = vmul.f32 %v1218, 0.25
        %v1317 = vmul.f32 %v1223, 0.25
        %v1318 = vmul.f32 %v1228, 0.25
        %v1319 = vmul.f32 %v1233, 0.25
        %v1320 = vmul.f32 %v1238, 0.25
        %v1321 = vmul.f32 %v1243, 0.25
        %v1322 = vmul.f32 %v1248, 0.25
        %v1323 = vmul.f32 %v1253, 0.25
        %v1324 = vmul.f32 %v1258, 0.25
        %v1325 = vmul.f32 %v1263, 0.25
        %v1326 = vmul.f32 %v1268, 0.25
        %v1327 = vmul.f32 %v1273, 0.25
        %v1328 = vmul.f32 %v1278, 0.25
        %v1329 = vmul.f32 %v1283, 0.25
        %v1330 = vmul.f32 %v1288, 0.25
        %v1331 = vmul.f32 %v1293, 0.25
        %v1332 = vmul.f32 %v1298, 0.25
        %vm1333 = vcmask 64512
        %v1334 = vsel %vm1333, %v1301, -inf
        %v1335 = vsel %vm1333, %v1309, -inf
        %v1336 = vmax.f32 %v1334, %v1335
        %v1337 = vsel %vm1333, %v1302, -inf
        %v1338 = vsel %vm1333, %v1310, -inf
        %v1339 = vmax.f32 %v1337, %v1338
        %v1340 = vsel %vm1333, %v1303, -inf
        %v1341 = vsel %vm1333, %v1311, -inf
        %v1342 = vmax.f32 %v1340, %v1341
        %v1343 = vsel %vm1333, %v1304, -inf
        %v1344 = vsel %vm1333, %v1312, -inf
        %v1345 = vmax.f32 %v1343, %v1344
        %v1346 = vsel %vm1333, %v1305, -inf
        %v1347 = vsel %vm1333, %v1313, -inf
        %v1348 = vmax.f32 %v1346, %v1347
        %v1349 = vsel %vm1333, %v1306, -inf
        %v1350 = vsel %vm1333, %v1314, -inf
        %v1351 = vmax.f32 %v1349, %v1350
        %v1352 = vsel %vm1333, %v1307, -inf
        %v1353 = vsel %vm1333, %v1315, -inf
        %v1354 = vmax.f32 %v1352, %v1353
        %v1355 = vsel %vm1333, %v1308, -inf
        %v1356 = vsel %vm1333, %v1316, -inf
        %v1357 = vmax.f32 %v1355, %v1356
        %v1358 = vsel %vm1333, %v1317, -inf
        %v1359 = vsel %vm1333, %v1325, -inf
        %v1360 = vmax.f32 %v1358, %v1359
        %v1361 = vsel %vm1333, %v1318, -inf
        %v1362 = vsel %vm1333, %v1326, -inf
        %v1363 = vmax.f32 %v1361, %v1362
        %v1364 = vsel %vm1333, %v1319, -inf
        %v1365 = vsel %vm1333, %v1327, -inf
        %v1366 = vmax.f32 %v1364, %v1365
        %v1367 = vsel %vm1333, %v1320, -inf
        %v1368 = vsel %vm1333, %v1328, -inf
        %v1369 = vmax.f32 %v1367, %v1368
        %v1370 = vsel %vm1333, %v1321, -inf
        %v1371 = vsel %vm1333, %v1329, -inf
        %v1372 = vmax.f32 %v1370, %v1371
        %v1373 = vsel %vm1333, %v1322, -inf
        %v1374 = vsel %vm1333, %v1330, -inf
        %v1375 = vmax.f32 %v1373, %v1374
        %v1376 = vsel %vm1333, %v1323, -inf
        %v1377 = vsel %vm1333, %v1331, -inf
        %v1378 = vmax.f32 %v1376, %v1377
        %v1379 = vsel %vm1333, %v1324, -inf
        %v1380 = vsel %vm1333, %v1332, -inf
        %v1381 = vmax.f32 %v1379, %v1380
        %v1382 = vsub.f32 %v1301, %v1336
        %v1383 = vsub.f32 %v1302, %v1339
        %v1384 = vsub.f32 %v1303, %v1342
        %v1385 = vsub.f32 %v1304, %v1345
        %v1386 = vsub.f32 %v1305, %v1348
        %v1387 = vsub.f32 %v1306, %v1351
        %v1388 = vsub.f32 %v1307, %v1354
        %v1389 = vsub.f32 %v1308, %v1357
        %v1390 = vsub.f32 %v1309, %v1336
        %v1391 = vsub.f32 %v1310, %v1339
        %v1392 = vsub.f32 %v1311, %v1342
        %v1393 = vsub.f32 %v1312, %v1345
        %v1394 = vsub.f32 %v1313, %v1348
        %v1395 = vsub.f32 %v1314, %v1351
        %v1396 = vsub.f32 %v1315, %v1354
        %v1397 = vsub.f32 %v1316, %v1357
        %v1398 = vsub.f32 %v1317, %v1360
        %v1399 = vsub.f32 %v1318, %v1363
        %v1400 = vsub.f32 %v1319, %v1366
        %v1401 = vsub.f32 %v1320, %v1369
        %v1402 = vsub.f32 %v1321, %v1372
        %v1403 = vsub.f32 %v1322, %v1375
        %v1404 = vsub.f32 %v1323, %v1378
        %v1405 = vsub.f32 %v1324, %v1381
        %v1406 = vsub.f32 %v1325, %v1360
        %v1407 = vsub.f32 %v1326, %v1363
        %v1408 = vsub.f32 %v1327, %v1366
        %v1409 = vsub.f32 %v1328, %v1369
        %v1410 = vsub.f32 %v1329, %v1372
        %v1411 = vsub.f32 %v1330, %v1375
        %v1412 = vsub.f32 %v1331, %v1378
        %v1413 = vsub.f32 %v1332, %v1381
        %v1414 = vmul.f32 %v1382, 1.442695
        %v1415 = vpow.pop %v1414
        %v1416 = vmul.f32 %v1383, 1.442695
        %v1417 = vpow.pop %v1416
        %v1418 = vmul.f32 %v1384, 1.442695
        %v1419 = vpow.pop %v1418
        %v1420 = vmul.f32 %v1385, 1.442695
        %v1421 = vpow.pop %v1420
        %v1422 = vmul.f32 %v1386, 1.442695
        %v1423 = vpow.pop %v1422
        %v1424 = vmul.f32 %v1387, 1.442695
        %v1425 = vpow.pop %v1424
        %v1426 = vmul.f32 %v1388, 1.442695
        %v1427 = vpow.pop %v1426
        %v1428 = vmul.f32 %v1389, 1.442695
        %v1429 = vpow.pop %v1428
        %v1430 = vmul.f32 %v1390, 1.442695
        %v1431 = vpow.pop %v1430
        %v1432 = vmul.f32 %v1391, 1.442695
        %v1433 = vpow.pop %v1432
        %v1434 = vmul.f32 %v1392, 1.442695
        %v1435 = vpow.pop %v1434
        %v1436 = vmul.f32 %v1393, 1.442695
        %v1437 = vpow.pop %v1436
        %v1438 = vmul.f32 %v1394, 1.442695
        %v1439 = vpow.pop %v1438
        %v1440 = vmul.f32 %v1395, 1.442695
        %v1441 = vpow.pop %v1440
        %v1442 = vmul.f32 %v1396, 1.442695
        %v1443 = vpow.pop %v1442
        %v1444 = vmul.f32 %v1397, 1.442695
        %v1445 = vpow.pop %v1444
        %v1446 = vmul.f32 %v1398, 1.442695
        %v1447 = vpow.pop %v1446
        %v1448 = vmul.f32 %v1399, 1.442695
        %v1449 = vpow.pop %v1448
        %v1450 = vmul.f32 %v1400, 1.442695
        %v1451 = vpow.pop %v1450
        %v1452 = vmul.f32 %v1401, 1.442695
        %v1453 = vpow.pop %v1452
        %v1454 = vmul.f32 %v1402, 1.442695
        %v1455 = vpow.pop %v1454
        %v1456 = vmul.f32 %v1403, 1.442695
        %v1457 = vpow.pop %v1456
        %v1458 = vmul.f32 %v1404, 1.442695
        %v1459 = vpow.pop %v1458
        %v1460 = vmul.f32 %v1405, 1.442695
        %v1461 = vpow.pop %v1460
        %v1462 = vmul.f32 %v1406, 1.442695
        %v1463 = vpow.pop %v1462
        %v1464 = vmul.f32 %v1407, 1.442695
        %v1465 = vpow.pop %v1464
        %v1466 = vmul.f32 %v1408, 1.442695
        %v1467 = vpow.pop %v1466
        %v1468 = vmul.f32 %v1409, 1.442695
        %v1469 = vpow.pop %v1468
        %v1470 = vmul.f32 %v1410, 1.442695
        %v1471 = vpow.pop %v1470
        %v1472 = vmul.f32 %v1411, 1.442695
        %v1473 = vpow.pop %v1472
        %v1474 = vmul.f32 %v1412, 1.442695
        %v1475 = vpow.pop %v1474
        %v1476 = vmul.f32 %v1413, 1.442695
        %v1477 = vpow.pop %v1476
        %v1478 = vsel %vm1333, %v1415, 0.0
        %v1479 = vsel %vm1333, %v1431, 0.0
        %v1480 = vadd.f32 %v1478, %v1479
        %v1481 = vsel %vm1333, %v1417, 0.0
        %v1482 = vsel %vm1333, %v1433, 0.0
        %v1483 = vadd.f32 %v1481, %v1482
        %v1484 = vsel %vm1333, %v1419, 0.0
        %v1485 = vsel %vm1333, %v1435, 0.0
        %v1486 = vadd.f32 %v1484, %v1485
        %v1487 = vsel %vm1333, %v1421, 0.0
        %v1488 = vsel %vm1333, %v1437, 0.0
        %v1489 = vadd.f32 %v1487, %v1488
        %v1490 = vsel %vm1333, %v1423, 0.0
        %v1491 = vsel %vm1333, %v1439, 0.0
        %v1492 = vadd.f32 %v1490, %v1491
        %v1493 = vsel %vm1333, %v1425, 0.0
        %v1494 = vsel %vm1333, %v1441, 0.0
        %v1495 = vadd.f32 %v1493, %v1494
        %v1496 = vsel %vm1333, %v1427, 0.0
        %v1497 = vsel %vm1333, %v1443, 0.0
        %v1498 = vadd.f32 %v1496, %v1497
        %v1499 = vsel %vm1333, %v1429, 0.0
        %v1500 = vsel %vm1333, %v1445, 0.0
        %v1501 = vadd.f32 %v1499, %v1500
        %v1502 = vsel %vm1333, %v1447, 0.0
        %v1503 = vsel %vm1333, %v1463, 0.0
        %v1504 = vadd.f32 %v1502, %v1503
        %v1505 = vsel %vm1333, %v1449, 0.0
        %v1506 = vsel %vm1333, %v1465, 0.0
        %v1507 = vadd.f32 %v1505, %v1506
        %v1508 = vsel %vm1333, %v1451, 0.0
        %v1509 = vsel %vm1333, %v1467, 0.0
        %v1510 = vadd.f32 %v1508, %v1509
        %v1511 = vsel %vm1333, %v1453, 0.0
        %v1512 = vsel %vm1333, %v1469, 0.0
        %v1513 = vadd.f32 %v1511, %v1512
        %v1514 = vsel %vm1333, %v1455, 0.0
        %v1515 = vsel %vm1333, %v1471, 0.0
        %v1516 = vadd.f32 %v1514, %v1515
        %v1517 = vsel %vm1333, %v1457, 0.0
        %v1518 = vsel %vm1333, %v1473, 0.0
        %v1519 = vadd.f32 %v1517, %v1518
        %v1520 = vsel %vm1333, %v1459, 0.0
        %v1521 = vsel %vm1333, %v1475, 0.0
        %v1522 = vadd.f32 %v1520, %v1521
        %v1523 = vsel %vm1333, %v1461, 0.0
        %v1524 = vsel %vm1333, %v1477, 0.0
        %v1525 = vadd.f32 %v1523, %v1524
        %v1526 = vrcp.pop %v1480
        %v1527 = vrcp.pop %v1483
        %v1528 = vrcp.pop %v1486
        %v1529 = vrcp.pop %v1489
        %v1530 = vrcp.pop %v1492
        %v1531 = vrcp.pop %v1495
        %v1532 = vrcp.pop %v1498
        %v1533 = vrcp.pop %v1501
        %v1534 = vrcp.pop %v1504
        %v1535 = vrcp.pop %v1507
        %v1536 = vrcp.pop %v1510
        %v1537 = vrcp.pop %v1513
        %v1538 = vrcp.pop %v1516
        %v1539 = vrcp.pop %v1519
        %v1540 = vrcp.pop %v1522
        %v1541 = vrcp.pop %v1525
        %v1542 = vmul.f32 %v1415, %v1526
        %v1543 = vmul.f32 %v1417, %v1527
        %v1544 = vmul.f32 %v1419, %v1528
        %v1545 = vmul.f32 %v1421, %v1529
        %v1546 = vmul.f32 %v1423, %v1530
        %v1547 = vmul.f32 %v1425, %v1531
        %v1548 = vmul.f32 %v1427, %v1532
        %v1549 = vmul.f32 %v1429, %v1533
        %v1550 = vmul.f32 %v1431, %v1526
        %v1551 = vmul.f32 %v1433, %v1527
        %v1552 = vmul.f32 %v1435, %v1528
        %v1553 = vmul.f32 %v1437, %v1529
        %v1554 = vmul.f32 %v1439, %v1530
        %v1555 = vmul.f32 %v1441, %v1531
        %v1556 = vmul.f32 %v1443, %v1532
        %v1557 = vmul.f32 %v1445, %v1533
        %v1558 = vmul.f32 %v1447, %v1534
        %v1559 = vmul.f32 %v1449, %v1535
        %v1560 = vmul.f32 %v1451, %v1536
        %v1561 = vmul.f32 %v1453, %v1537
        %v1562 = vmul.f32 %v1455, %v1538
        %v1563 = vmul.f32 %v1457, %v1539
        %v1564 = vmul.f32 %v1459, %v1540
        %v1565 = vmul.f32 %v1461, %v1541
        %v1566 = vmul.f32 %v1463, %v1534
        %v1567 = vmul.f32 %v1465, %v1535
        %v1568 = vmul.f32 %v1467, %v1536
        %v1569 = vmul.f32 %v1469, %v1537
        %v1570 = vmul.f32 %v1471, %v1538
        %v1571 = vmul.f32 %v1473, %v1539
        %v1572 = vmul.f32 %v1475, %v1540
        %v1573 = vmul.f32 %v1477, %v1541
        %v1574 = vld [vmem:[%s8] sm:$0xff]
        %v1576 = vsel %vm1333, %v1542, 0
        %v1579 = vsel %vm1333, %v1543, 0
        %v1582 = vsel %vm1333, %v1544, 0
        %v1585 = vsel %vm1333, %v1545, 0
        %v1588 = vsel %vm1333, %v1546, 0
        %v1591 = vsel %vm1333, %v1547, 0
        %v1594 = vsel %vm1333, %v1548, 0
        %v1597 = vsel %vm1333, %v1549, 0
        %v1600 = vsel %vm1333, %v1550, 0
        %v1603 = vsel %vm1333, %v1551, 0
        %v1606 = vsel %vm1333, %v1552, 0
        %v1609 = vsel %vm1333, %v1553, 0
        %v1612 = vsel %vm1333, %v1554, 0
        %v1615 = vsel %vm1333, %v1555, 0
        %v1618 = vsel %vm1333, %v1556, 0
        %v1621 = vsel %vm1333, %v1557, 0
        %v1624 = vsel %vm1333, %v1558, 0
        %v1627 = vsel %vm1333, %v1559, 0
        %v1630 = vsel %vm1333, %v1560, 0
        %v1633 = vsel %vm1333, %v1561, 0
        %v1636 = vsel %vm1333, %v1562, 0
        %v1639 = vsel %vm1333, %v1563, 0
        %v1642 = vsel %vm1333, %v1564, 0
        %v1645 = vsel %vm1333, %v1565, 0
        %v1648 = vsel %vm1333, %v1566, 0
        %v1651 = vsel %vm1333, %v1567, 0
        %v1654 = vsel %vm1333, %v1568, 0
        %v1657 = vsel %vm1333, %v1569, 0
        %v1660 = vsel %vm1333, %v1570, 0
        %v1663 = vsel %vm1333, %v1571, 0
        %v1666 = vsel %vm1333, %v1572, 0
        %v1669 = vsel %vm1333, %v1573, 0
        %1671 = vmatprep.subr.mxu0 0.0
        %1672 = vmatpush1.msra.mxu0 0.0
        %1673 = vmatprep.subr.mxu0 0.0
        %1674 = vmatpush1.msra.mxu0 0.0
        %1675 = vmatprep.subr.mxu0 0.0
        %1676 = vmatpush1.msra.mxu0 0.0
        %1677 = vmatprep.subr.mxu0 0.0
        %1678 = vmatpush1.msra.mxu0 0.0
        %1679 = vmatprep.subr.mxu0 0.0
        %1680 = vmatpush1.msra.mxu0 0.0
        %1681 = vmatprep.subr.mxu0 0.0
        %1682 = vmatpush1.msra.mxu0 0.0
        %1683 = vmatprep.subr.mxu0 0.0
        %1684 = vmatpush1.msra.mxu0 0.0
        %1685 = vmatprep.subr.mxu0 0.0
        %1686 = vmatpush1.msra.mxu0 0.0
        %1687 = vmatprep.subr.mxu0 0.0
        %1688 = vmatpush1.msra.mxu0 0.0
        %1689 = vmatprep.subr.mxu0 0.0
        %1690 = vmatpush1.msra.mxu0 0.0
        %1691 = vmatprep.subr.mxu0 0.0
        %1692 = vmatpush1.msra.mxu0 0.0
        %1693 = vmatprep.subr.mxu0 0.0
        %1694 = vmatpush1.msra.mxu0 0.0
        %1695 = vmatprep.subr.mxu0 0.0
        %1696 = vmatpush1.msra.mxu0 0.0
        %1697 = vmatprep.subr.mxu0 0.0
        %1698 = vmatpush1.msra.mxu0 0.0
        %1699 = vmatprep.subr.mxu0 0.0
        %1700 = vmatpush1.msra.mxu0 0.0
        %1701 = vmatprep.subr.mxu0 0.0
        %1702 = vmatpush1.msra.mxu0 %v1574
        %1703 = vmatprep.subr.mxu0 0.0
        %1704 = vmatpush2.msra.mxu0 0.0
        %1705 = vmatprep.subr.mxu0 0.0
        %1706 = vmatpush2.msra.mxu0 0.0
        %1707 = vmatprep.subr.mxu0 0.0
        %1708 = vmatpush2.msra.mxu0 0.0
        %1709 = vmatprep.subr.mxu0 0.0
        %1710 = vmatpush2.msra.mxu0 0.0
        %1711 = vmatprep.subr.mxu0 0.0
        %1712 = vmatpush2.msra.mxu0 0.0
        %1713 = vmatprep.subr.mxu0 0.0
        %1714 = vmatpush2.msra.mxu0 0.0
        %1715 = vmatprep.subr.mxu0 0.0
        %1716 = vmatpush2.msra.mxu0 0.0
        %1717 = vmatprep.subr.mxu0 0.0
        %1718 = vmatpush2.msra.mxu0 0.0
        %1719 = vmatprep.subr.mxu0 0.0
        %1720 = vmatpush2.msra.mxu0 0.0
        %1721 = vmatprep.subr.mxu0 0.0
        %1722 = vmatpush2.msra.mxu0 0.0
        %1723 = vmatprep.subr.mxu0 0.0
        %1724 = vmatpush2.msra.mxu0 0.0
        %1725 = vmatprep.subr.mxu0 0.0
        %1726 = vmatpush2.msra.mxu0 0.0
        %1727 = vmatprep.subr.mxu0 0.0
        %1728 = vmatpush2.msra.mxu0 0.0
        %1729 = vmatprep.subr.mxu0 0.0
        %1730 = vmatpush2.msra.mxu0 0.0
        %1731 = vmatprep.subr.mxu0 0.0
        %1732 = vmatpush2.msra.mxu0 0.0
        %1733 = vmatprep.subr.mxu0 0.0
        %1734 = vmatpush2.msra.mxu0 0.0
        %1735 = vmatprep.mubr.f32.mxu0 0.0
        %1736 = vmatmul.mubr.f32.gmra.mxu0 %v1576
        %v1737 = vpop.f32.mrf.mxu0
        %v1738 = vadd.f32 0.0, %v1737
        %v1739 = vpop.f32.mrf.mxu0
        %1740 = vmatprep.mubr.f32.mxu0 0.0
        %1741 = vmatmul.mubr.f32.gmra.mxu0 %v1579
        %v1742 = vpop.f32.mrf.mxu0
        %v1743 = vadd.f32 0.0, %v1742
        %v1744 = vpop.f32.mrf.mxu0
        %1745 = vmatprep.mubr.f32.mxu0 0.0
        %1746 = vmatmul.mubr.f32.gmra.mxu0 %v1582
        %v1747 = vpop.f32.mrf.mxu0
        %v1748 = vadd.f32 0.0, %v1747
        %v1749 = vpop.f32.mrf.mxu0
        %1750 = vmatprep.mubr.f32.mxu0 0.0
        %1751 = vmatmul.mubr.f32.gmra.mxu0 %v1585
        %v1752 = vpop.f32.mrf.mxu0
        %v1753 = vadd.f32 0.0, %v1752
        %v1754 = vpop.f32.mrf.mxu0
        %1755 = vmatprep.mubr.f32.mxu0 0.0
        %1756 = vmatmul.mubr.f32.gmra.mxu0 %v1588
        %v1757 = vpop.f32.mrf.mxu0
        %v1758 = vadd.f32 0.0, %v1757
        %v1759 = vpop.f32.mrf.mxu0
        %1760 = vmatprep.mubr.f32.mxu0 0.0
        %1761 = vmatmul.mubr.f32.gmra.mxu0 %v1591
        %v1762 = vpop.f32.mrf.mxu0
        %v1763 = vadd.f32 0.0, %v1762
        %v1764 = vpop.f32.mrf.mxu0
        %1765 = vmatprep.mubr.f32.mxu0 0.0
        %1766 = vmatmul.mubr.f32.gmra.mxu0 %v1594
        %v1767 = vpop.f32.mrf.mxu0
        %v1768 = vadd.f32 0.0, %v1767
        %v1769 = vpop.f32.mrf.mxu0
        %1770 = vmatprep.mubr.f32.mxu0 0.0
        %1771 = vmatmul.mubr.f32.gmra.mxu0 %v1597
        %v1772 = vpop.f32.mrf.mxu0
        %v1773 = vadd.f32 0.0, %v1772
        %v1774 = vpop.f32.mrf.mxu0
        %1775 = vmatprep.mubr.f32.mxu0 0.0
        %1776 = vmatmul.mubr.f32.gmra.mxu0 %v1600
        %v1777 = vpop.f32.mrf.mxu0
        %v1778 = vadd.f32 0.0, %v1777
        %v1779 = vpop.f32.mrf.mxu0
        %1780 = vmatprep.mubr.f32.mxu0 0.0
        %1781 = vmatmul.mubr.f32.gmra.mxu0 %v1603
        %v1782 = vpop.f32.mrf.mxu0
        %v1783 = vadd.f32 0.0, %v1782
        %v1784 = vpop.f32.mrf.mxu0
        %1785 = vmatprep.mubr.f32.mxu0 0.0
        %1786 = vmatmul.mubr.f32.gmra.mxu0 %v1606
        %v1787 = vpop.f32.mrf.mxu0
        %v1788 = vadd.f32 0.0, %v1787
        %v1789 = vpop.f32.mrf.mxu0
        %1790 = vmatprep.mubr.f32.mxu0 0.0
        %1791 = vmatmul.mubr.f32.gmra.mxu0 %v1609
        %v1792 = vpop.f32.mrf.mxu0
        %v1793 = vadd.f32 0.0, %v1792
        %v1794 = vpop.f32.mrf.mxu0
        %1795 = vmatprep.mubr.f32.mxu0 0.0
        %1796 = vmatmul.mubr.f32.gmra.mxu0 %v1612
        %v1797 = vpop.f32.mrf.mxu0
        %v1798 = vadd.f32 0.0, %v1797
        %v1799 = vpop.f32.mrf.mxu0
        %1800 = vmatprep.mubr.f32.mxu0 0.0
        %1801 = vmatmul.mubr.f32.gmra.mxu0 %v1615
        %v1802 = vpop.f32.mrf.mxu0
        %v1803 = vadd.f32 0.0, %v1802
        %v1804 = vpop.f32.mrf.mxu0
        %1805 = vmatprep.mubr.f32.mxu0 0.0
        %1806 = vmatmul.mubr.f32.gmra.mxu0 %v1618
        %v1807 = vpop.f32.mrf.mxu0
        %v1808 = vadd.f32 0.0, %v1807
        %v1809 = vpop.f32.mrf.mxu0
        %1810 = vmatprep.mubr.f32.mxu0 0.0
        %1811 = vmatmul.mubr.f32.gmra.mxu0 %v1621
        %v1812 = vpop.f32.mrf.mxu0
        %v1813 = vadd.f32 0.0, %v1812
        %v1814 = vpop.f32.mrf.mxu0
        %1815 = vmatprep.mubr.f32.mxu0 0.0
        %1816 = vmatmul.mubr.f32.gmra.mxu0 %v1624
        %v1817 = vpop.f32.mrf.mxu0
        %v1818 = vadd.f32 0.0, %v1817
        %v1819 = vpop.f32.mrf.mxu0
        %1820 = vmatprep.mubr.f32.mxu0 0.0
        %1821 = vmatmul.mubr.f32.gmra.mxu0 %v1627
        %v1822 = vpop.f32.mrf.mxu0
        %v1823 = vadd.f32 0.0, %v1822
        %v1824 = vpop.f32.mrf.mxu0
        %1825 = vmatprep.mubr.f32.mxu0 0.0
        %1826 = vmatmul.mubr.f32.gmra.mxu0 %v1630
        %v1827 = vpop.f32.mrf.mxu0
        %v1828 = vadd.f32 0.0, %v1827
        %v1829 = vpop.f32.mrf.mxu0
        %1830 = vmatprep.mubr.f32.mxu0 0.0
        %1831 = vmatmul.mubr.f32.gmra.mxu0 %v1633
        %v1832 = vpop.f32.mrf.mxu0
        %v1833 = vadd.f32 0.0, %v1832
        %v1834 = vpop.f32.mrf.mxu0
        %1835 = vmatprep.mubr.f32.mxu0 0.0
        %1836 = vmatmul.mubr.f32.gmra.mxu0 %v1636
        %v1837 = vpop.f32.mrf.mxu0
        %v1838 = vadd.f32 0.0, %v1837
        %v1839 = vpop.f32.mrf.mxu0
        %1840 = vmatprep.mubr.f32.mxu0 0.0
        %1841 = vmatmul.mubr.f32.gmra.mxu0 %v1639
        %v1842 = vpop.f32.mrf.mxu0
        %v1843 = vadd.f32 0.0, %v1842
        %v1844 = vpop.f32.mrf.mxu0
        %1845 = vmatprep.mubr.f32.mxu0 0.0
        %1846 = vmatmul.mubr.f32.gmra.mxu0 %v1642
        %v1847 = vpop.f32.mrf.mxu0
        %v1848 = vadd.f32 0.0, %v1847
        %v1849 = vpop.f32.mrf.mxu0
        %1850 = vmatprep.mubr.f32.mxu0 0.0
        %1851 = vmatmul.mubr.f32.gmra.mxu0 %v1645
        %v1852 = vpop.f32.mrf.mxu0
        %v1853 = vadd.f32 0.0, %v1852
        %v1854 = vpop.f32.mrf.mxu0
        %1855 = vmatprep.mubr.f32.mxu0 0.0
        %1856 = vmatmul.mubr.f32.gmra.mxu0 %v1648
        %v1857 = vpop.f32.mrf.mxu0
        %v1858 = vadd.f32 0.0, %v1857
        %v1859 = vpop.f32.mrf.mxu0
        %1860 = vmatprep.mubr.f32.mxu0 0.0
        %1861 = vmatmul.mubr.f32.gmra.mxu0 %v1651
        %v1862 = vpop.f32.mrf.mxu0
        %v1863 = vadd.f32 0.0, %v1862
        %v1864 = vpop.f32.mrf.mxu0
        %1865 = vmatprep.mubr.f32.mxu0 0.0
        %1866 = vmatmul.mubr.f32.gmra.mxu0 %v1654
        %v1867 = vpop.f32.mrf.mxu0
        %v1868 = vadd.f32 0.0, %v1867
        %v1869 = vpop.f32.mrf.mxu0
        %1870 = vmatprep.mubr.f32.mxu0 0.0
        %1871 = vmatmul.mubr.f32.gmra.mxu0 %v1657
        %v1872 = vpop.f32.mrf.mxu0
        %v1873 = vadd.f32 0.0, %v1872
        %v1874 = vpop.f32.mrf.mxu0
        %1875 = vmatprep.mubr.f32.mxu0 0.0
        %1876 = vmatmul.mubr.f32.gmra.mxu0 %v1660
        %v1877 = vpop.f32.mrf.mxu0
        %v1878 = vadd.f32 0.0, %v1877
        %v1879 = vpop.f32.mrf.mxu0
        %1880 = vmatprep.mubr.f32.mxu0 0.0
        %1881 = vmatmul.mubr.f32.gmra.mxu0 %v1663
        %v1882 = vpop.f32.mrf.mxu0
        %v1883 = vadd.f32 0.0, %v1882
        %v1884 = vpop.f32.mrf.mxu0
        %1885 = vmatprep.mubr.f32.mxu0 0.0
        %1886 = vmatmul.mubr.f32.gmra.mxu0 %v1666
        %v1887 = vpop.f32.mrf.mxu0
        %v1888 = vadd.f32 0.0, %v1887
        %v1889 = vpop.f32.mrf.mxu0
        %1890 = vmatprep.mubr.f32.mxu0 0.0
        %1891 = vmatmul.mubr.f32.gmra.mxu0 %v1669
        %v1892 = vpop.f32.mrf.mxu0
        %v1893 = vadd.f32 0.0, %v1892
        %v1894 = vpop.f32.mrf.mxu0
        %1895 = vdwg.mxu0
        %v1896 = vmul.f32 %v1738, %v950
        %v1897 = vmul.f32 %v1743, %v955
        %v1898 = vmul.f32 %v1748, %v960
        %v1899 = vmul.f32 %v1753, %v965
        %v1900 = vmul.f32 %v1758, %v970
        %v1901 = vmul.f32 %v1763, %v975
        %v1902 = vmul.f32 %v1768, %v980
        %v1903 = vmul.f32 %v1773, %v985
        %v1904 = vmul.f32 %v1778, %v990
        %v1905 = vmul.f32 %v1783, %v995
        %v1906 = vmul.f32 %v1788, %v1000
        %v1907 = vmul.f32 %v1793, %v1005
        %v1908 = vmul.f32 %v1798, %v1010
        %v1909 = vmul.f32 %v1803, %v1015
        %v1910 = vmul.f32 %v1808, %v1020
        %v1911 = vmul.f32 %v1813, %v1025
        %v1912 = vmul.f32 %v1818, %v950
        %v1913 = vmul.f32 %v1823, %v955
        %v1914 = vmul.f32 %v1828, %v960
        %v1915 = vmul.f32 %v1833, %v965
        %v1916 = vmul.f32 %v1838, %v970
        %v1917 = vmul.f32 %v1843, %v975
        %v1918 = vmul.f32 %v1848, %v980
        %v1919 = vmul.f32 %v1853, %v985
        %v1920 = vmul.f32 %v1858, %v990
        %v1921 = vmul.f32 %v1863, %v995
        %v1922 = vmul.f32 %v1868, %v1000
        %v1923 = vmul.f32 %v1873, %v1005
        %v1924 = vmul.f32 %v1878, %v1010
        %v1925 = vmul.f32 %v1883, %v1015
        %v1926 = vmul.f32 %v1888, %v1020
        %v1927 = vmul.f32 %v1893, %v1025
        %v1928 = vadd.f32 %v1896, %v1904
        %v1929 = vadd.f32 %v1897, %v1905
        %v1930 = vadd.f32 %v1898, %v1906
        %v1931 = vadd.f32 %v1899, %v1907
        %v1932 = vadd.f32 %v1900, %v1908
        %v1933 = vadd.f32 %v1901, %v1909
        %v1934 = vadd.f32 %v1902, %v1910
        %v1935 = vadd.f32 %v1903, %v1911
        %v1936 = vadd.f32 %v1912, %v1920
        %v1937 = vadd.f32 %v1913, %v1921
        %v1938 = vadd.f32 %v1914, %v1922
        %v1939 = vadd.f32 %v1915, %v1923
        %v1940 = vadd.f32 %v1916, %v1924
        %v1941 = vadd.f32 %v1917, %v1925
        %v1942 = vadd.f32 %v1918, %v1926
        %v1943 = vadd.f32 %v1919, %v1927
        %v1944 = vld [vmem:[%s5] sm:$0xff]
        %v1945 = vld [vmem:[%s5 + $0x8] sm:$0xff]
        %v1946 = vld [vmem:[%s5 + $0x10] sm:$0xff]
        %v1947 = vld [vmem:[%s5 + $0x18] sm:$0xff]
        %v1948 = vld [vmem:[%s5 + $0x20] sm:$0xff]
        %v1949 = vld [vmem:[%s5 + $0x28] sm:$0xff]
        %v1950 = vld [vmem:[%s5 + $0x30] sm:$0xff]
        %v1951 = vld [vmem:[%s5 + $0x38] sm:$0xff]
        %v1952 = vld [vmem:[%s5 + $0x40] sm:$0xff]
        %v1953 = vld [vmem:[%s5 + $0x48] sm:$0xff]
        %v1954 = vld [vmem:[%s5 + $0x50] sm:$0xff]
        %v1955 = vld [vmem:[%s5 + $0x58] sm:$0xff]
        %v1956 = vld [vmem:[%s5 + $0x60] sm:$0xff]
        %v1957 = vld [vmem:[%s5 + $0x68] sm:$0xff]
        %v1958 = vld [vmem:[%s5 + $0x70] sm:$0xff]
        %v1959 = vld [vmem:[%s5 + $0x78] sm:$0xff]
        %v1960 = vld [vmem:[%s6] sm:$0x1]
        %v1962 = vlaneseq
        %v1963 = vshrl.u32 %v1962, 7
        %v1964 = vsub.s32 0, %v1963
        %v1965 = vrot.slane %v1960, %v1964
        %1967 = vmatprep.subr.mxu0 0.0
        %1968 = vmatpush1.msra.mxu0 %v1959
        %1969 = vmatprep.subr.mxu0 0.0
        %1970 = vmatpush1.msra.mxu0 %v1958
        %1971 = vmatprep.subr.mxu0 0.0
        %1972 = vmatpush1.msra.mxu0 %v1957
        %1973 = vmatprep.subr.mxu0 0.0
        %1974 = vmatpush1.msra.mxu0 %v1956
        %1975 = vmatprep.subr.mxu0 0.0
        %1976 = vmatpush1.msra.mxu0 %v1955
        %1977 = vmatprep.subr.mxu0 0.0
        %1978 = vmatpush1.msra.mxu0 %v1954
        %1979 = vmatprep.subr.mxu0 0.0
        %1980 = vmatpush1.msra.mxu0 %v1953
        %1981 = vmatprep.subr.mxu0 0.0
        %1982 = vmatpush1.msra.mxu0 %v1952
        %1983 = vmatprep.subr.mxu0 0.0
        %1984 = vmatpush1.msra.mxu0 %v1951
        %1985 = vmatprep.subr.mxu0 0.0
        %1986 = vmatpush1.msra.mxu0 %v1950
        %1987 = vmatprep.subr.mxu0 0.0
        %1988 = vmatpush1.msra.mxu0 %v1949
        %1989 = vmatprep.subr.mxu0 0.0
        %1990 = vmatpush1.msra.mxu0 %v1948
        %1991 = vmatprep.subr.mxu0 0.0
        %1992 = vmatpush1.msra.mxu0 %v1947
        %1993 = vmatprep.subr.mxu0 0.0
        %1994 = vmatpush1.msra.mxu0 %v1946
        %1995 = vmatprep.subr.mxu0 0.0
        %1996 = vmatpush1.msra.mxu0 %v1945
        %1997 = vmatprep.subr.mxu0 0.0
        %1998 = vmatpush1.msra.mxu0 %v1944
        %1999 = vmatprep.subr.mxu0 0.0
        %2000 = vmatpush2.msra.mxu0 0.0
        %2001 = vmatprep.subr.mxu0 0.0
        %2002 = vmatpush2.msra.mxu0 0.0
        %2003 = vmatprep.subr.mxu0 0.0
        %2004 = vmatpush2.msra.mxu0 0.0
        %2005 = vmatprep.subr.mxu0 0.0
        %2006 = vmatpush2.msra.mxu0 0.0
        %2007 = vmatprep.subr.mxu0 0.0
        %2008 = vmatpush2.msra.mxu0 0.0
        %2009 = vmatprep.subr.mxu0 0.0
        %2010 = vmatpush2.msra.mxu0 0.0
        %2011 = vmatprep.subr.mxu0 0.0
        %2012 = vmatpush2.msra.mxu0 0.0
        %2013 = vmatprep.subr.mxu0 0.0
        %2014 = vmatpush2.msra.mxu0 0.0
        %2015 = vmatprep.subr.mxu0 0.0
        %2016 = vmatpush2.msra.mxu0 0.0
        %2017 = vmatprep.subr.mxu0 0.0
        %2018 = vmatpush2.msra.mxu0 0.0
        %2019 = vmatprep.subr.mxu0 0.0
        %2020 = vmatpush2.msra.mxu0 0.0
        %2021 = vmatprep.subr.mxu0 0.0
        %2022 = vmatpush2.msra.mxu0 0.0
        %2023 = vmatprep.subr.mxu0 0.0
        %2024 = vmatpush2.msra.mxu0 0.0
        %2025 = vmatprep.subr.mxu0 0.0
        %2026 = vmatpush2.msra.mxu0 0.0
        %2027 = vmatprep.subr.mxu0 0.0
        %2028 = vmatpush2.msra.mxu0 0.0
        %2029 = vmatprep.subr.mxu0 0.0
        %2030 = vmatpush2.msra.mxu0 0.0
        %2031 = vmatprep.mubr.f32.mxu0 0.0
        %2032 = vmatmul.mubr.f32.gmra.mxu0 %v1928
        %v2033 = vpop.f32.mrf.mxu0
        %v2034 = vadd.f32 %v1965, %v2033
        %v2035 = vpop.f32.mrf.mxu0
        %2036 = vmatprep.mubr.f32.mxu0 0.0
        %2037 = vmatmul.mubr.f32.gmra.mxu0 %v1929
        %v2038 = vpop.f32.mrf.mxu0
        %v2039 = vadd.f32 %v1965, %v2038
        %v2040 = vpop.f32.mrf.mxu0
        %2041 = vmatprep.mubr.f32.mxu0 0.0
        %2042 = vmatmul.mubr.f32.gmra.mxu0 %v1930
        %v2043 = vpop.f32.mrf.mxu0
        %v2044 = vadd.f32 %v1965, %v2043
        %v2045 = vpop.f32.mrf.mxu0
        %2046 = vmatprep.mubr.f32.mxu0 0.0
        %2047 = vmatmul.mubr.f32.gmra.mxu0 %v1931
        %v2048 = vpop.f32.mrf.mxu0
        %v2049 = vadd.f32 %v1965, %v2048
        %v2050 = vpop.f32.mrf.mxu0
        %2051 = vmatprep.mubr.f32.mxu0 0.0
        %2052 = vmatmul.mubr.f32.gmra.mxu0 %v1932
        %v2053 = vpop.f32.mrf.mxu0
        %v2054 = vadd.f32 %v1965, %v2053
        %v2055 = vpop.f32.mrf.mxu0
        %2056 = vmatprep.mubr.f32.mxu0 0.0
        %2057 = vmatmul.mubr.f32.gmra.mxu0 %v1933
        %v2058 = vpop.f32.mrf.mxu0
        %v2059 = vadd.f32 %v1965, %v2058
        %v2060 = vpop.f32.mrf.mxu0
        %2061 = vmatprep.mubr.f32.mxu0 0.0
        %2062 = vmatmul.mubr.f32.gmra.mxu0 %v1934
        %v2063 = vpop.f32.mrf.mxu0
        %v2064 = vadd.f32 %v1965, %v2063
        %v2065 = vpop.f32.mrf.mxu0
        %2066 = vmatprep.mubr.f32.mxu0 0.0
        %2067 = vmatmul.mubr.f32.gmra.mxu0 %v1935
        %v2068 = vpop.f32.mrf.mxu0
        %v2069 = vadd.f32 %v1965, %v2068
        %v2070 = vpop.f32.mrf.mxu0
        %2071 = vmatprep.mubr.f32.mxu0 0.0
        %2072 = vmatmul.mubr.f32.gmra.mxu0 %v1936
        %v2073 = vpop.f32.mrf.mxu0
        %v2074 = vadd.f32 %v1965, %v2073
        %v2075 = vpop.f32.mrf.mxu0
        %2076 = vmatprep.mubr.f32.mxu0 0.0
        %2077 = vmatmul.mubr.f32.gmra.mxu0 %v1937
        %v2078 = vpop.f32.mrf.mxu0
        %v2079 = vadd.f32 %v1965, %v2078
        %v2080 = vpop.f32.mrf.mxu0
        %2081 = vmatprep.mubr.f32.mxu0 0.0
        %2082 = vmatmul.mubr.f32.gmra.mxu0 %v1938
        %v2083 = vpop.f32.mrf.mxu0
        %v2084 = vadd.f32 %v1965, %v2083
        %v2085 = vpop.f32.mrf.mxu0
        %2086 = vmatprep.mubr.f32.mxu0 0.0
        %2087 = vmatmul.mubr.f32.gmra.mxu0 %v1939
        %v2088 = vpop.f32.mrf.mxu0
        %v2089 = vadd.f32 %v1965, %v2088
        %v2090 = vpop.f32.mrf.mxu0
        %2091 = vmatprep.mubr.f32.mxu0 0.0
        %2092 = vmatmul.mubr.f32.gmra.mxu0 %v1940
        %v2093 = vpop.f32.mrf.mxu0
        %v2094 = vadd.f32 %v1965, %v2093
        %v2095 = vpop.f32.mrf.mxu0
        %2096 = vmatprep.mubr.f32.mxu0 0.0
        %2097 = vmatmul.mubr.f32.gmra.mxu0 %v1941
        %v2098 = vpop.f32.mrf.mxu0
        %v2099 = vadd.f32 %v1965, %v2098
        %v2100 = vpop.f32.mrf.mxu0
        %2101 = vmatprep.mubr.f32.mxu0 0.0
        %2102 = vmatmul.mubr.f32.gmra.mxu0 %v1942
        %v2103 = vpop.f32.mrf.mxu0
        %v2104 = vadd.f32 %v1965, %v2103
        %v2105 = vpop.f32.mrf.mxu0
        %2106 = vmatprep.mubr.f32.mxu0 0.0
        %2107 = vmatmul.mubr.f32.gmra.mxu0 %v1943
        %v2108 = vpop.f32.mrf.mxu0
        %v2109 = vadd.f32 %v1965, %v2108
        %v2110 = vpop.f32.mrf.mxu0
        %2111 = vdwg.mxu0
        %v2112 = vadd.f32 %v509, %v2034
        %v2113 = vadd.f32 %v514, %v2039
        %v2114 = vadd.f32 %v519, %v2044
        %v2115 = vadd.f32 %v524, %v2049
        %v2116 = vadd.f32 %v529, %v2054
        %v2117 = vadd.f32 %v534, %v2059
        %v2118 = vadd.f32 %v539, %v2064
        %v2119 = vadd.f32 %v544, %v2069
        %v2120 = vadd.f32 %v619, %v2074
        %v2121 = vadd.f32 %v624, %v2079
        %v2122 = vadd.f32 %v629, %v2084
        %v2123 = vadd.f32 %v634, %v2089
        %v2124 = vadd.f32 %v639, %v2094
        %v2125 = vadd.f32 %v644, %v2099
        %v2126 = vadd.f32 %v649, %v2104
        %v2127 = vadd.f32 %v654, %v2109
        %2128 = vst [vmem:[%s342] sm:$0xff] %v2112
        %2129 = vst [vmem:[%s342 + $0x8] sm:$0xff] %v2113
        %2130 = vst [vmem:[%s342 + $0x10] sm:$0xff] %v2114
        %2131 = vst [vmem:[%s342 + $0x18] sm:$0xff] %v2115
        %2132 = vst [vmem:[%s342 + $0x20] sm:$0xff] %v2116
        %2133 = vst [vmem:[%s342 + $0x28] sm:$0xff] %v2117
        %2134 = vst [vmem:[%s342 + $0x30] sm:$0xff] %v2118
        %2135 = vst [vmem:[%s342 + $0x38] sm:$0xff] %v2119
        %2136 = vst [vmem:[%s342 + $0x40] sm:$0xff] %v2120
        %2137 = vst [vmem:[%s342 + $0x48] sm:$0xff] %v2121
        %2138 = vst [vmem:[%s342 + $0x50] sm:$0xff] %v2122
        %2139 = vst [vmem:[%s342 + $0x58] sm:$0xff] %v2123
        %2140 = vst [vmem:[%s342 + $0x60] sm:$0xff] %v2124
        %2141 = vst [vmem:[%s342 + $0x68] sm:$0xff] %v2125
        %2142 = vst [vmem:[%s342 + $0x70] sm:$0xff] %v2126
        %2143 = vst [vmem:[%s342 + $0x78] sm:$0xff] %v2127
        %s2144 = sand.u32 %s230, 1
        %s2145 = scalar_lea.sflag [#allocation3], %s2144
        %s2146 = sand.u32 %s230, 1
        %s2147 = smul.addr %s2146, 128
        %s2148 = scalar_lea.vmem [#allocation2], %s2147
        // Predicated region
        $region57: #{channel_embedding_forward.1} parent=55 // pred_check
          %p2149 = pneg %p240
        $region58: #{channel_embedding_forward.1} parent=55 // pred_check_branch
          %2151 = sbr.rel (%p2149) target = $region60
        $region59: #{channel_embedding_forward.1} parent=55 // pred_region
          #allocation5 [shape = 'u32[6]{0}', space=smem, size = 0x18, scoped, tag = 'DMA stride descriptor']
          %s2152 = smul.u32 8, %s23
          %s2154 = ssub.s32 2048, 2048
          %2155 = vsyncadd %s2145, %s2154
          %s2156 = smul.addr %s2152, 128
          %s2157 = scalar_lea.hbm %s9, %s2156
          %s2159 = sshll.u32 1, 14
          %s2160 = sxor.u32 4294967295, %s2159
          %s2163 = sshll.u32 7, 18
          %s2164 = sxor.u32 4294967295, %s2163
          %s2165 = sand.u32 0, %s2164
          %s2167 = sor.u32 %s2165, 0
          %s2168 = sshll.u32 %s2148, 4
          %s2169 = int_to_ptr.vmem [resolvable:$true] %s2168
          %2175 = sst [smem:[#allocation5]] 1024
          %s2176 = scalar_lea.smem [#allocation5], 1
          %2177 = sst [smem:[%s2176]] 2048
          %s2178 = scalar_lea.smem [#allocation5], 2
          %2179 = sst [smem:[%s2178]] 8
          %s2180 = scalar_lea.smem [#allocation5], 3
          %2181 = sst [smem:[%s2180]] 128
          %s2182 = scalar_lea.smem [#allocation5], 4
          %2183 = sst [smem:[%s2182]] 128
          %s2184 = scalar_lea.smem [#allocation5], 5
          %2185 = sst [smem:[%s2184]] 8
          %2187 = dma.general %s2169, 2048, %s2157, %s2145, 131072, [#allocation5], %s2167, 0
        $region60: #{channel_embedding_forward.1} parent=55 // pred_fallthru
          _
      $region56: #{channel_embedding_forward.1} parent=5 // pred_fallthru
        _
      %p2188 = scmp.le.s32.totalorder 2, %s18
      // Predicated region
      $region61: #{channel_embedding_forward.1} parent=5 // pred_check
        %p2189 = pneg %p2188
      $region62: #{channel_embedding_forward.1} parent=5 // pred_check_branch
        %2191 = sbr.rel (%p2189) target = $region64
      $region63: #{channel_embedding_forward.1} parent=5 // pred_region
        %s2192 = ssub.s32 %s18, 2
        // Predicated region
        $region65: #{channel_embedding_forward.1} parent=63 // pred_check
          %p2193 = pneg %p246
        $region66: #{channel_embedding_forward.1} parent=63 // pred_check_branch
          %2195 = sbr.rel (%p2193) target = $region68
        $region67: #{channel_embedding_forward.1} parent=63 // pred_region
          %s2196 = sand.u32 %s231, 1
          %s2197 = scalar_lea.sflag [#allocation3], %s2196
          %s2198 = sand.u32 %s231, 1
          %s2199 = smul.addr %s2198, 128
          %s2200 = scalar_lea.vmem [#allocation2], %s2199
          %2201 = dma.done %s2197, 2048
        $region68: #{channel_embedding_forward.1} parent=63 // pred_fallthru
          _
      $region64: #{channel_embedding_forward.1} parent=5 // pred_fallthru
        _
    $region6: #{channel_embedding_forward.1} parent=1 // loop_footer
      %s22 = sadd.s32 1, %s18
    $region7: #{channel_embedding_forward.1} parent=1 // loop_footer_branch
      %17 = sbr.rel target = $region3
    $region8: #{channel_embedding_forward.1} parent=1 // loop_exit
      _
    %2202 = vsyncpa [#allocation3], 1
    %s2203 = scalar_lea.sflag [#allocation3], 1
    %2204 = vsyncpa %s2203, 1

</llo_original>
